<compile_context>
chip_gen: v6e
topology: v6e:2x2x1
jax: 0.10.0
libtpu: 0.0.40
codegen_flags: <defaults>
</compile_context>

<pallas_src>
import functools

import jax
import jax.numpy as jnp
from jax.experimental import pallas as pl
from jax.experimental.pallas import tpu as pltpu


# -----------------------------------------------------------------------------
# Fused kernel: 5x (linear + relu) followed by a GRU cell, for one batch tile.
# -----------------------------------------------------------------------------
def feature_layer_kernel(
    x_ref, h_ref,
    w1_ref, b1_ref, w2_ref, b2_ref, w3_ref, b3_ref, w4_ref, b4_ref,
    w5_ref, b5_ref,
    wih_ref, bih_ref, whh_ref, bhh_ref,
    o_ref,
):
    f32 = jnp.float32
    x = x_ref[...].astype(f32)          # (TB, IN)
    h = h_ref[...].astype(f32)          # (TB, H)
    H = h.shape[-1]

    def linear_relu(v, w_ref, b_ref):
        acc = jnp.dot(v, w_ref[...], preferred_element_type=f32) + b_ref[...]
        return jnp.maximum(acc, 0.0)

    x = linear_relu(x, w1_ref, b1_ref)  # (TB, 2H)
    x = linear_relu(x, w2_ref, b2_ref)  # (TB, 2H)
    x = linear_relu(x, w3_ref, b3_ref)  # (TB, 2H)
    x = linear_relu(x, w4_ref, b4_ref)  # (TB, 2H)
    x = linear_relu(x, w5_ref, b5_ref)  # (TB, H)

    # GRU cell (PyTorch nn.GRUCell semantics), gates stacked [r; z; n].
    gi = jnp.dot(x, wih_ref[...], preferred_element_type=f32) + bih_ref[...]  # (TB, 3H)
    gh = jnp.dot(h, whh_ref[...], preferred_element_type=f32) + bhh_ref[...]  # (TB, 3H)

    r = jax.nn.sigmoid(gi[:, 0:H] + gh[:, 0:H])
    z = jax.nn.sigmoid(gi[:, H:2 * H] + gh[:, H:2 * H])
    n = jnp.tanh(gi[:, 2 * H:3 * H] + r * gh[:, 2 * H:3 * H])
    h_new = (1.0 - z) * n + z * h

    # NOTE: H=32 < 128 lanes => lane-masked stores; acceptable since (B, H) is
    # the module's required output layout.
    o_ref[...] = h_new.astype(o_ref.dtype)


# -----------------------------------------------------------------------------
# Wrapper: grid over batch, params VMEM-resident.
# -----------------------------------------------------------------------------
def feature_layer_forward(inputs, hidden_state, params, *, block_b=128):
    """inputs: (B, IN) f32; hidden_state: (..., H) f32; params: pre-transposed tuple."""
    (w1, b1, w2, b2, w3, b3, w4, b4, w5, b5, wih, bih, whh, bhh) = params
    H = w5.shape[1]
    hidden = hidden_state.reshape(-1, H)

    B, IN = inputs.shape
    TB = min(block_b, B)
    if TB < B:
        Bp = pl.cdiv(B, TB) * TB
        if Bp != B:
            pad = Bp - B
            inputs = jnp.pad(inputs, ((0, pad), (0, 0)))
            hidden = jnp.pad(hidden, ((0, pad), (0, 0)))
    else:
        Bp = B
    grid = (Bp // TB,)

    def batched(shape):
        return pl.BlockSpec(shape, lambda i: (i, 0))

    def resident(shape):
        return pl.BlockSpec(shape, lambda i: (0, 0))

    in_specs = [
        batched((TB, IN)),            # inputs
        batched((TB, H)),             # hidden
        resident(w1.shape), resident(b1.shape),
        resident(w2.shape), resident(b2.shape),
        resident(w3.shape), resident(b3.shape),
        resident(w4.shape), resident(b4.shape),
        resident(w5.shape), resident(b5.shape),
        resident(wih.shape), resident(bih.shape),
        resident(whh.shape), resident(bhh.shape),
    ]

    out = pl.pallas_call(
        feature_layer_kernel,
        out_shape=jax.ShapeDtypeStruct((Bp, H), inputs.dtype),
        grid=grid,
        in_specs=in_specs,
        out_specs=batched((TB, H)),
        compiler_params=pltpu.CompilerParams(
            dimension_semantics=("parallel",)),
    )(inputs, hidden,
      w1, b1, w2, b2, w3, b3, w4, b4, w5, b5, wih, bih, whh, bhh)

    return out[:B]


# -----------------------------------------------------------------------------
# One-time parameter preparation (hoisted out of the per-call forward path):
# transpose PyTorch (out, in) weights to (in, out) and reshape biases to (1, N).
# -----------------------------------------------------------------------------
def prepare_params(raw):
    def lin(name):
        return raw[f"{name}_w"].T, raw[f"{name}_b"].reshape(1, -1)

    w1, b1 = lin("fc1")
    w2, b2 = lin("fc2")
    w3, b3 = lin("fc3")
    w4, b4 = lin("fc4")
    w5, b5 = lin("fc5")
    wih, bih = raw["gru_w_ih"].T, raw["gru_b_ih"].reshape(1, -1)
    whh, bhh = raw["gru_w_hh"].T, raw["gru_b_hh"].reshape(1, -1)
    return (w1, b1, w2, b2, w3, b3, w4, b4, w5, b5, wih, bih, whh, bhh)


# -----------------------------------------------------------------------------
# Pure-JAX reference (PyTorch semantics) for correctness checking.
# -----------------------------------------------------------------------------
def reference_forward(inputs, hidden_state, raw, H):
    def lin(x, name):
        return x @ raw[f"{name}_w"].T + raw[f"{name}_b"]

    x = jax.nn.relu(lin(inputs, "fc1"))
    x = jax.nn.relu(lin(x, "fc2"))
    x = jax.nn.relu(lin(x, "fc3"))
    x = jax.nn.relu(lin(x, "fc4"))
    x = jax.nn.relu(lin(x, "fc5"))

    h = hidden_state.reshape(-1, H)
    gi = x @ raw["gru_w_ih"].T + raw["gru_b_ih"]
    gh = h @ raw["gru_w_hh"].T + raw["gru_b_hh"]
    r = jax.nn.sigmoid(gi[:, 0:H] + gh[:, 0:H])
    z = jax.nn.sigmoid(gi[:, H:2 * H] + gh[:, H:2 * H])
    n = jnp.tanh(gi[:, 2 * H:3 * H] + r * gh[:, 2 * H:3 * H])
    return (1.0 - z) * n + z * h


if __name__ == "__main__":
    # Module-implied small shapes: rnn_hidden_dim=32, obs input_shape=48.
    # Batch = (envs x agents x timesteps) flattened so the grid has work.
    IN, H = 48, 32
    B = 256
    H2 = 2 * H

    key = jax.random.PRNGKey(0)
    keys = jax.random.split(key, 20)
    ki = iter(keys)

    def linear_init(k, out_dim, in_dim):
        kw, kb = jax.random.split(k)
        bound = 1.0 / (in_dim ** 0.5)
        w = jax.random.uniform(kw, (out_dim, in_dim), minval=-bound, maxval=bound,
                               dtype=jnp.float32)
        b = jax.random.uniform(kb, (out_dim,), minval=-bound, maxval=bound,
                               dtype=jnp.float32)
        return w, b

    raw = {}
    raw["fc1_w"], raw["fc1_b"] = linear_init(next(ki), H2, IN)
    raw["fc2_w"], raw["fc2_b"] = linear_init(next(ki), H2, H2)
    raw["fc3_w"], raw["fc3_b"] = linear_init(next(ki), H2, H2)
    raw["fc4_w"], raw["fc4_b"] = linear_init(next(ki), H2, H2)
    raw["fc5_w"], raw["fc5_b"] = linear_init(next(ki), H, H2)
    # GRUCell params (PyTorch layout: weight_* is (3H, in), gates [r; z; n]).
    raw["gru_w_ih"], raw["gru_b_ih"] = linear_init(next(ki), 3 * H, H)
    raw["gru_w_hh"], raw["gru_b_hh"] = linear_init(next(ki), 3 * H, H)

    inputs = jax.random.normal(next(ki), (B, IN), dtype=jnp.float32)
    hidden_state = jax.random.normal(next(ki), (B, H), dtype=jnp.float32)

    # One-time param prep (transpose + bias reshape hoisted out of forward).
    params = prepare_params(raw)

    fwd = jax.jit(functools.partial(feature_layer_forward, block_b=128))
    h_out = fwd(inputs, hidden_state, params)
    jax.block_until_ready(h_out)

    h_ref = reference_forward(inputs, hidden_state, raw, H)
    assert h_out.shape == (B, H)
    assert jnp.allclose(h_out, h_ref, atol=1e-4, rtol=1e-4), \
        "mismatch vs reference FeatureLayer forward"

    print("KERNEL_OK")
</pallas_src>

<mosaic_0001>
module attributes {stable_mosaic.version = 11 : i64} {
  func.func @feature_layer_kernel(%arg0: i32, %arg1: memref<128x48xf32, #tpu.memory_space<vmem>>, %arg2: memref<128x32xf32, #tpu.memory_space<vmem>>, %arg3: memref<48x64xf32, #tpu.memory_space<vmem>>, %arg4: memref<1x64xf32, #tpu.memory_space<vmem>>, %arg5: memref<64x64xf32, #tpu.memory_space<vmem>>, %arg6: memref<1x64xf32, #tpu.memory_space<vmem>>, %arg7: memref<64x64xf32, #tpu.memory_space<vmem>>, %arg8: memref<1x64xf32, #tpu.memory_space<vmem>>, %arg9: memref<64x64xf32, #tpu.memory_space<vmem>>, %arg10: memref<1x64xf32, #tpu.memory_space<vmem>>, %arg11: memref<64x32xf32, #tpu.memory_space<vmem>>, %arg12: memref<1x32xf32, #tpu.memory_space<vmem>>, %arg13: memref<32x96xf32, #tpu.memory_space<vmem>>, %arg14: memref<1x96xf32, #tpu.memory_space<vmem>>, %arg15: memref<32x96xf32, #tpu.memory_space<vmem>>, %arg16: memref<1x96xf32, #tpu.memory_space<vmem>>, %arg17: memref<128x32xf32, #tpu.memory_space<vmem>>) attributes {dimension_semantics = [#tpu.dimension_semantics<parallel>], iteration_bounds = array<i64: 2>, scalar_prefetch = 0 : i64, scratch_operands = 0 : i64, tpu.core_type = #tpu.core_type<tc>, window_params = [{transform_indices = @transform_0, window_bounds = array<i64: 128, 48>}, {transform_indices = @transform_1, window_bounds = array<i64: 128, 32>}, {pipeline_mode = #tpu.pipeline_mode<synchronous>, transform_indices = @transform_2, window_bounds = array<i64: 48, 64>}, {pipeline_mode = #tpu.pipeline_mode<synchronous>, transform_indices = @transform_3, window_bounds = array<i64: 1, 64>}, {pipeline_mode = #tpu.pipeline_mode<synchronous>, transform_indices = @transform_4, window_bounds = array<i64: 64, 64>}, {pipeline_mode = #tpu.pipeline_mode<synchronous>, transform_indices = @transform_5, window_bounds = array<i64: 1, 64>}, {pipeline_mode = #tpu.pipeline_mode<synchronous>, transform_indices = @transform_6, window_bounds = array<i64: 64, 64>}, {pipeline_mode = #tpu.pipeline_mode<synchronous>, transform_indices = @transform_7, window_bounds = array<i64: 1, 64>}, {pipeline_mode = #tpu.pipeline_mode<synchronous>, transform_indices = @transform_8, window_bounds = array<i64: 64, 64>}, {pipeline_mode = #tpu.pipeline_mode<synchronous>, transform_indices = @transform_9, window_bounds = array<i64: 1, 64>}, {pipeline_mode = #tpu.pipeline_mode<synchronous>, transform_indices = @transform_10, window_bounds = array<i64: 64, 32>}, {pipeline_mode = #tpu.pipeline_mode<synchronous>, transform_indices = @transform_11, window_bounds = array<i64: 1, 32>}, {pipeline_mode = #tpu.pipeline_mode<synchronous>, transform_indices = @transform_12, window_bounds = array<i64: 32, 96>}, {pipeline_mode = #tpu.pipeline_mode<synchronous>, transform_indices = @transform_13, window_bounds = array<i64: 1, 96>}, {pipeline_mode = #tpu.pipeline_mode<synchronous>, transform_indices = @transform_14, window_bounds = array<i64: 32, 96>}, {pipeline_mode = #tpu.pipeline_mode<synchronous>, transform_indices = @transform_15, window_bounds = array<i64: 1, 96>}, {transform_indices = @transform_16, window_bounds = array<i64: 128, 32>}]} {
    %c0 = arith.constant 0 : index
    %c0_0 = arith.constant 0 : index
    %0 = vector.load %arg1[%c0, %c0_0] : memref<128x48xf32, #tpu.memory_space<vmem>>, vector<128x48xf32>
    %c0_1 = arith.constant 0 : index
    %c0_2 = arith.constant 0 : index
    %1 = vector.load %arg2[%c0_1, %c0_2] : memref<128x32xf32, #tpu.memory_space<vmem>>, vector<128x32xf32>
    %c0_3 = arith.constant 0 : index
    %c0_4 = arith.constant 0 : index
    %2 = vector.load %arg3[%c0_3, %c0_4] : memref<48x64xf32, #tpu.memory_space<vmem>>, vector<48x64xf32>
    %cst = arith.constant dense<0.000000e+00> : vector<128x64xf32>
    %3 = tpu.matmul %0, %2, %cst {dimension_numbers = #tpu.dot_dimension_numbers<[1], [0], [0], [1], [0, 0, 1, 1], [], []>} : vector<128x48xf32>, vector<48x64xf32>, vector<128x64xf32> -> vector<128x64xf32>
    %c0_5 = arith.constant 0 : index
    %c0_6 = arith.constant 0 : index
    %4 = vector.load %arg4[%c0_5, %c0_6] : memref<1x64xf32, #tpu.memory_space<vmem>>, vector<1x64xf32>
    %5 = vector.broadcast %4 : vector<1x64xf32> to vector<128x64xf32>
    %6 = arith.addf %3, %5 : vector<128x64xf32>
    %cst_7 = arith.constant 0.000000e+00 : f32
    %7 = vector.broadcast %cst_7 : f32 to vector<128x64xf32>
    %8 = arith.maximumf %6, %7 : vector<128x64xf32>
    %c0_8 = arith.constant 0 : index
    %c0_9 = arith.constant 0 : index
    %9 = vector.load %arg5[%c0_8, %c0_9] : memref<64x64xf32, #tpu.memory_space<vmem>>, vector<64x64xf32>
    %cst_10 = arith.constant dense<0.000000e+00> : vector<128x64xf32>
    %10 = tpu.matmul %8, %9, %cst_10 {dimension_numbers = #tpu.dot_dimension_numbers<[1], [0], [0], [1], [0, 0, 1, 1], [], []>} : vector<128x64xf32>, vector<64x64xf32>, vector<128x64xf32> -> vector<128x64xf32>
    %c0_11 = arith.constant 0 : index
    %c0_12 = arith.constant 0 : index
    %11 = vector.load %arg6[%c0_11, %c0_12] : memref<1x64xf32, #tpu.memory_space<vmem>>, vector<1x64xf32>
    %12 = vector.broadcast %11 : vector<1x64xf32> to vector<128x64xf32>
    %13 = arith.addf %10, %12 : vector<128x64xf32>
    %cst_13 = arith.constant 0.000000e+00 : f32
    %14 = vector.broadcast %cst_13 : f32 to vector<128x64xf32>
    %15 = arith.maximumf %13, %14 : vector<128x64xf32>
    %c0_14 = arith.constant 0 : index
    %c0_15 = arith.constant 0 : index
    %16 = vector.load %arg7[%c0_14, %c0_15] : memref<64x64xf32, #tpu.memory_space<vmem>>, vector<64x64xf32>
    %cst_16 = arith.constant dense<0.000000e+00> : vector<128x64xf32>
    %17 = tpu.matmul %15, %16, %cst_16 {dimension_numbers = #tpu.dot_dimension_numbers<[1], [0], [0], [1], [0, 0, 1, 1], [], []>} : vector<128x64xf32>, vector<64x64xf32>, vector<128x64xf32> -> vector<128x64xf32>
    %c0_17 = arith.constant 0 : index
    %c0_18 = arith.constant 0 : index
    %18 = vector.load %arg8[%c0_17, %c0_18] : memref<1x64xf32, #tpu.memory_space<vmem>>, vector<1x64xf32>
    %19 = vector.broadcast %18 : vector<1x64xf32> to vector<128x64xf32>
    %20 = arith.addf %17, %19 : vector<128x64xf32>
    %cst_19 = arith.constant 0.000000e+00 : f32
    %21 = vector.broadcast %cst_19 : f32 to vector<128x64xf32>
    %22 = arith.maximumf %20, %21 : vector<128x64xf32>
    %c0_20 = arith.constant 0 : index
    %c0_21 = arith.constant 0 : index
    %23 = vector.load %arg9[%c0_20, %c0_21] : memref<64x64xf32, #tpu.memory_space<vmem>>, vector<64x64xf32>
    %cst_22 = arith.constant dense<0.000000e+00> : vector<128x64xf32>
    %24 = tpu.matmul %22, %23, %cst_22 {dimension_numbers = #tpu.dot_dimension_numbers<[1], [0], [0], [1], [0, 0, 1, 1], [], []>} : vector<128x64xf32>, vector<64x64xf32>, vector<128x64xf32> -> vector<128x64xf32>
    %c0_23 = arith.constant 0 : index
    %c0_24 = arith.constant 0 : index
    %25 = vector.load %arg10[%c0_23, %c0_24] : memref<1x64xf32, #tpu.memory_space<vmem>>, vector<1x64xf32>
    %26 = vector.broadcast %25 : vector<1x64xf32> to vector<128x64xf32>
    %27 = arith.addf %24, %26 : vector<128x64xf32>
    %cst_25 = arith.constant 0.000000e+00 : f32
    %28 = vector.broadcast %cst_25 : f32 to vector<128x64xf32>
    %29 = arith.maximumf %27, %28 : vector<128x64xf32>
    %c0_26 = arith.constant 0 : index
    %c0_27 = arith.constant 0 : index
    %30 = vector.load %arg11[%c0_26, %c0_27] : memref<64x32xf32, #tpu.memory_space<vmem>>, vector<64x32xf32>
    %cst_28 = arith.constant dense<0.000000e+00> : vector<128x32xf32>
    %31 = tpu.matmul %29, %30, %cst_28 {dimension_numbers = #tpu.dot_dimension_numbers<[1], [0], [0], [1], [0, 0, 1, 1], [], []>} : vector<128x64xf32>, vector<64x32xf32>, vector<128x32xf32> -> vector<128x32xf32>
    %c0_29 = arith.constant 0 : index
    %c0_30 = arith.constant 0 : index
    %32 = vector.load %arg12[%c0_29, %c0_30] : memref<1x32xf32, #tpu.memory_space<vmem>>, vector<1x32xf32>
    %33 = vector.broadcast %32 : vector<1x32xf32> to vector<128x32xf32>
    %34 = arith.addf %31, %33 : vector<128x32xf32>
    %cst_31 = arith.constant 0.000000e+00 : f32
    %35 = vector.broadcast %cst_31 : f32 to vector<128x32xf32>
    %36 = arith.maximumf %34, %35 : vector<128x32xf32>
    %c0_32 = arith.constant 0 : index
    %c0_33 = arith.constant 0 : index
    %37 = vector.load %arg13[%c0_32, %c0_33] : memref<32x96xf32, #tpu.memory_space<vmem>>, vector<32x96xf32>
    %cst_34 = arith.constant dense<0.000000e+00> : vector<128x96xf32>
    %38 = tpu.matmul %36, %37, %cst_34 {dimension_numbers = #tpu.dot_dimension_numbers<[1], [0], [0], [1], [0, 0, 1, 1], [], []>} : vector<128x32xf32>, vector<32x96xf32>, vector<128x96xf32> -> vector<128x96xf32>
    %c0_35 = arith.constant 0 : index
    %c0_36 = arith.constant 0 : index
    %39 = vector.load %arg14[%c0_35, %c0_36] : memref<1x96xf32, #tpu.memory_space<vmem>>, vector<1x96xf32>
    %40 = vector.broadcast %39 : vector<1x96xf32> to vector<128x96xf32>
    %41 = arith.addf %38, %40 : vector<128x96xf32>
    %c0_37 = arith.constant 0 : index
    %c0_38 = arith.constant 0 : index
    %42 = vector.load %arg15[%c0_37, %c0_38] : memref<32x96xf32, #tpu.memory_space<vmem>>, vector<32x96xf32>
    %cst_39 = arith.constant dense<0.000000e+00> : vector<128x96xf32>
    %43 = tpu.matmul %1, %42, %cst_39 {dimension_numbers = #tpu.dot_dimension_numbers<[1], [0], [0], [1], [0, 0, 1, 1], [], []>} : vector<128x32xf32>, vector<32x96xf32>, vector<128x96xf32> -> vector<128x96xf32>
    %c0_40 = arith.constant 0 : index
    %c0_41 = arith.constant 0 : index
    %44 = vector.load %arg16[%c0_40, %c0_41] : memref<1x96xf32, #tpu.memory_space<vmem>>, vector<1x96xf32>
    %45 = vector.broadcast %44 : vector<1x96xf32> to vector<128x96xf32>
    %46 = arith.addf %43, %45 : vector<128x96xf32>
    %47 = vector.extract_strided_slice %41 {offsets = [0, 0], sizes = [128, 32], strides = [1, 1]} : vector<128x96xf32> to vector<128x32xf32>
    %48 = vector.extract_strided_slice %46 {offsets = [0, 0], sizes = [128, 32], strides = [1, 1]} : vector<128x96xf32> to vector<128x32xf32>
    %49 = arith.addf %47, %48 : vector<128x32xf32>
    %50 = arith.negf %49 : vector<128x32xf32>
    %51 = math.exp %50 : vector<128x32xf32>
    %cst_42 = arith.constant 1.000000e+00 : f32
    %52 = vector.broadcast %cst_42 : f32 to vector<128x32xf32>
    %53 = arith.addf %52, %51 : vector<128x32xf32>
    %54 = arith.divf %52, %53 : vector<128x32xf32>
    %55 = vector.extract_strided_slice %41 {offsets = [0, 32], sizes = [128, 32], strides = [1, 1]} : vector<128x96xf32> to vector<128x32xf32>
    %56 = vector.extract_strided_slice %46 {offsets = [0, 32], sizes = [128, 32], strides = [1, 1]} : vector<128x96xf32> to vector<128x32xf32>
    %57 = arith.addf %55, %56 : vector<128x32xf32>
    %58 = arith.negf %57 : vector<128x32xf32>
    %59 = math.exp %58 : vector<128x32xf32>
    %cst_43 = arith.constant 1.000000e+00 : f32
    %60 = vector.broadcast %cst_43 : f32 to vector<128x32xf32>
    %61 = arith.addf %60, %59 : vector<128x32xf32>
    %62 = arith.divf %60, %61 : vector<128x32xf32>
    %63 = vector.extract_strided_slice %41 {offsets = [0, 64], sizes = [128, 32], strides = [1, 1]} : vector<128x96xf32> to vector<128x32xf32>
    %64 = vector.extract_strided_slice %46 {offsets = [0, 64], sizes = [128, 32], strides = [1, 1]} : vector<128x96xf32> to vector<128x32xf32>
    %65 = arith.mulf %54, %64 : vector<128x32xf32>
    %66 = arith.addf %63, %65 : vector<128x32xf32>
    %67 = math.tanh %66 : vector<128x32xf32>
    %cst_44 = arith.constant 1.000000e+00 : f32
    %68 = vector.broadcast %cst_44 : f32 to vector<128x32xf32>
    %69 = arith.subf %68, %62 : vector<128x32xf32>
    %70 = arith.mulf %69, %67 : vector<128x32xf32>
    %71 = arith.mulf %62, %1 : vector<128x32xf32>
    %72 = arith.addf %70, %71 : vector<128x32xf32>
    %c0_45 = arith.constant 0 : index
    %c0_46 = arith.constant 0 : index
    %73 = vector.load %arg17[%c0_45, %c0_46] : memref<128x32xf32, #tpu.memory_space<vmem>>, vector<128x32xf32>
    tpu.vector_store %arg17[%c0_45, %c0_46], %72 {strides = array<i32>} : memref<128x32xf32, #tpu.memory_space<vmem>>, vector<128x32xf32>,
    return
  }
  func.func @transform_0(%arg0: i32) -> (i32, i32) {
    %c0_i32 = arith.constant 0 : i32
    %c0_i32_0 = arith.constant 0 : i32
    return %arg0, %c0_i32 : i32, i32
  }
  func.func @transform_1(%arg0: i32) -> (i32, i32) {
    %c0_i32 = arith.constant 0 : i32
    %c0_i32_0 = arith.constant 0 : i32
    return %arg0, %c0_i32 : i32, i32
  }
  func.func @transform_2(%arg0: i32) -> (i32, i32) {
    %c0_i32 = arith.constant 0 : i32
    %c0_i32_0 = arith.constant 0 : i32
    %c0_i32_1 = arith.constant 0 : i32
    return %c0_i32, %c0_i32_0 : i32, i32
  }
  func.func @transform_3(%arg0: i32) -> (i32, i32) {
    %c0_i32 = arith.constant 0 : i32
    %c0_i32_0 = arith.constant 0 : i32
    %c0_i32_1 = arith.constant 0 : i32
    return %c0_i32, %c0_i32_0 : i32, i32
  }
  func.func @transform_4(%arg0: i32) -> (i32, i32) {
    %c0_i32 = arith.constant 0 : i32
    %c0_i32_0 = arith.constant 0 : i32
    %c0_i32_1 = arith.constant 0 : i32
    return %c0_i32, %c0_i32_0 : i32, i32
  }
  func.func @transform_5(%arg0: i32) -> (i32, i32) {
    %c0_i32 = arith.constant 0 : i32
    %c0_i32_0 = arith.constant 0 : i32
    %c0_i32_1 = arith.constant 0 : i32
    return %c0_i32, %c0_i32_0 : i32, i32
  }
  func.func @transform_6(%arg0: i32) -> (i32, i32) {
    %c0_i32 = arith.constant 0 : i32
    %c0_i32_0 = arith.constant 0 : i32
    %c0_i32_1 = arith.constant 0 : i32
    return %c0_i32, %c0_i32_0 : i32, i32
  }
  func.func @transform_7(%arg0: i32) -> (i32, i32) {
    %c0_i32 = arith.constant 0 : i32
    %c0_i32_0 = arith.constant 0 : i32
    %c0_i32_1 = arith.constant 0 : i32
    return %c0_i32, %c0_i32_0 : i32, i32
  }
  func.func @transform_8(%arg0: i32) -> (i32, i32) {
    %c0_i32 = arith.constant 0 : i32
    %c0_i32_0 = arith.constant 0 : i32
    %c0_i32_1 = arith.constant 0 : i32
    return %c0_i32, %c0_i32_0 : i32, i32
  }
  func.func @transform_9(%arg0: i32) -> (i32, i32) {
    %c0_i32 = arith.constant 0 : i32
    %c0_i32_0 = arith.constant 0 : i32
    %c0_i32_1 = arith.constant 0 : i32
    return %c0_i32, %c0_i32_0 : i32, i32
  }
  func.func @transform_10(%arg0: i32) -> (i32, i32) {
    %c0_i32 = arith.constant 0 : i32
    %c0_i32_0 = arith.constant 0 : i32
    %c0_i32_1 = arith.constant 0 : i32
    return %c0_i32, %c0_i32_0 : i32, i32
  }
  func.func @transform_11(%arg0: i32) -> (i32, i32) {
    %c0_i32 = arith.constant 0 : i32
    %c0_i32_0 = arith.constant 0 : i32
    %c0_i32_1 = arith.constant 0 : i32
    return %c0_i32, %c0_i32_0 : i32, i32
  }
  func.func @transform_12(%arg0: i32) -> (i32, i32) {
    %c0_i32 = arith.constant 0 : i32
    %c0_i32_0 = arith.constant 0 : i32
    %c0_i32_1 = arith.constant 0 : i32
    return %c0_i32, %c0_i32_0 : i32, i32
  }
  func.func @transform_13(%arg0: i32) -> (i32, i32) {
    %c0_i32 = arith.constant 0 : i32
    %c0_i32_0 = arith.constant 0 : i32
    %c0_i32_1 = arith.constant 0 : i32
    return %c0_i32, %c0_i32_0 : i32, i32
  }
  func.func @transform_14(%arg0: i32) -> (i32, i32) {
    %c0_i32 = arith.constant 0 : i32
    %c0_i32_0 = arith.constant 0 : i32
    %c0_i32_1 = arith.constant 0 : i32
    return %c0_i32, %c0_i32_0 : i32, i32
  }
  func.func @transform_15(%arg0: i32) -> (i32, i32) {
    %c0_i32 = arith.constant 0 : i32
    %c0_i32_0 = arith.constant 0 : i32
    %c0_i32_1 = arith.constant 0 : i32
    return %c0_i32, %c0_i32_0 : i32, i32
  }
  func.func @transform_16(%arg0: i32) -> (i32, i32) {
    %c0_i32 = arith.constant 0 : i32
    %c0_i32_0 = arith.constant 0 : i32
    return %arg0, %c0_i32 : i32, i32
  }
}

</mosaic_0001>

<llo_original>
// kernel: feature_layer_forward.1
$region0: #{feature_layer_forward.1}
  #allocation0 [shape = 'u32[]', space=smem, size = 0x4, offset = 0x4, fixed_abs, tag = 'smem constant byte address 0x4 - core index']
  #allocation1 [shape = 'u32[144,128]{1,0:T(1,128)}', space=vmem, size = 0x12000, scoped, tag = 'internal scratch']
  %s0 = inlined_call_operand.vmem [shape: f32[256,48], index: 0, kind: input, shape index: {}]
  %s1 = inlined_call_operand.vmem [shape: f32[256,32], index: 1, kind: input, shape index: {}]
  %s2 = inlined_call_operand.vmem [shape: f32[48,64], index: 2, kind: input, shape index: {}]
  %s3 = inlined_call_operand.vmem [shape: f32[1,64], index: 3, kind: input, shape index: {}]
  %s4 = inlined_call_operand.vmem [shape: f32[64,64], index: 4, kind: input, shape index: {}]
  %s5 = inlined_call_operand.vmem [shape: f32[1,64], index: 5, kind: input, shape index: {}]
  %s6 = inlined_call_operand.vmem [shape: f32[64,64], index: 6, kind: input, shape index: {}]
  %s7 = inlined_call_operand.vmem [shape: f32[1,64], index: 7, kind: input, shape index: {}]
  %s8 = inlined_call_operand.vmem [shape: f32[64,64], index: 8, kind: input, shape index: {}]
  %s9 = inlined_call_operand.vmem [shape: f32[1,64], index: 9, kind: input, shape index: {}]
  %s10 = inlined_call_operand.vmem [shape: f32[64,32], index: 10, kind: input, shape index: {}]
  %s11 = inlined_call_operand.vmem [shape: f32[1,32], index: 11, kind: input, shape index: {}]
  %s12 = inlined_call_operand.vmem [shape: f32[32,96], index: 12, kind: input, shape index: {}]
  %s13 = inlined_call_operand.vmem [shape: f32[1,96], index: 13, kind: input, shape index: {}]
  %s14 = inlined_call_operand.vmem [shape: f32[32,96], index: 14, kind: input, shape index: {}]
  %s15 = inlined_call_operand.vmem [shape: f32[1,96], index: 15, kind: input, shape index: {}]
  %s16 = inlined_call_operand.vmem [shape: f32[256,32], index: 16, kind: output, shape index: {}]
  %s17 = sld [smem:[#allocation0]]
  $region97: #{feature_layer_forward.1} parent=0
    _
  %s19 = ssub.s32 1, %s17
  %s20 = scalar_select 0, %s19, %s17
  loop: start=0, step=1, limit=4
  $region2: #{feature_layer_forward.1} parent=0 // loop_pre_header
    _
  $region3: #{feature_layer_forward.1} parent=0 // loop_header
    %s22 = sphi 0, %s26
    %p23 = scmp.ge.s32.totalorder %s22, 4
    %s32 = sphi 0, %s34
    %s35 = sphi 0, %s32
    %s36 = sphi 0, %s35
    %s52 = sphi 0, %s36
    %s58 = sphi 0, %s60
    %s61 = sphi 0, %s58
    %s62 = sphi 0, %s61
    %s78 = sphi 0, %s62
    %s82 = sphi 0, %s82
    %s84 = sphi 0, %s82
    %s85 = sphi 0, %s84
    %s99 = sphi 0, %s85
    %s103 = sphi 0, %s103
    %s105 = sphi 0, %s103
    %s106 = sphi 0, %s105
    %s120 = sphi 0, %s106
    %s124 = sphi 0, %s124
    %s126 = sphi 0, %s124
    %s127 = sphi 0, %s126
    %s141 = sphi 0, %s127
    %s145 = sphi 0, %s145
    %s147 = sphi 0, %s145
    %s148 = sphi 0, %s147
    %s162 = sphi 0, %s148
    %s166 = sphi 0, %s166
    %s168 = sphi 0, %s166
    %s169 = sphi 0, %s168
    %s183 = sphi 0, %s169
    %s187 = sphi 0, %s187
    %s189 = sphi 0, %s187
    %s190 = sphi 0, %s189
    %s204 = sphi 0, %s190
    %s208 = sphi 0, %s208
    %s210 = sphi 0, %s208
    %s211 = sphi 0, %s210
    %s225 = sphi 0, %s211
    %s229 = sphi 0, %s229
    %s231 = sphi 0, %s229
    %s232 = sphi 0, %s231
    %s246 = sphi 0, %s232
    %s250 = sphi 0, %s250
    %s252 = sphi 0, %s250
    %s253 = sphi 0, %s252
    %s267 = sphi 0, %s253
    %s271 = sphi 0, %s271
    %s273 = sphi 0, %s271
    %s274 = sphi 0, %s273
    %s288 = sphi 0, %s274
    %s292 = sphi 0, %s292
    %s294 = sphi 0, %s292
    %s295 = sphi 0, %s294
    %s309 = sphi 0, %s295
    %s313 = sphi 0, %s313
    %s315 = sphi 0, %s313
    %s316 = sphi 0, %s315
    %s330 = sphi 0, %s316
    %s334 = sphi 0, %s334
    %s336 = sphi 0, %s334
    %s337 = sphi 0, %s336
    %s351 = sphi 0, %s337
    %s355 = sphi 0, %s355
    %s357 = sphi 0, %s355
    %s358 = sphi 0, %s357
    %s372 = sphi 0, %s358
    %s378 = sphi 0, %s380
    %s381 = sphi 0, %s378
    %s382 = sphi 0, %s381
    %s398 = sphi 0, %s382
  $region4: #{feature_layer_forward.1} parent=0 // loop_header_branch
    %25 = sbr.rel (%p23) target = $region8
  $region5: #{feature_layer_forward.1} parent=0 // loop_body
    %s27 = ssub.s32 %s22, 1
    %s28 = ssub.s32 %s22, 2
    %s29 = sadd.s32 %s22, 1
    %s30 = ssub.s32 %s22, %s29
    %p31 = scmp.eq.s32.totalorder %s30, 0
    %s33 = sadd.s32 %s32, 1
    %s34 = scalar_select %p31, %s32, %s33
    %p37 = pneg %p31
    %p38 = scmp.eq.s32.totalorder %s22, 1
    %p39 = por %p37, %p38
    %p40 = scmp.ne.s32.totalorder %s32, %s35
    %p41 = scmp.eq.s32.totalorder %s22, 0
    %p42 = por %p40, %p41
    %p43 = scmp.ne.s32.totalorder %s32, %s35
    %p44 = scmp.eq.s32.totalorder %s27, 1
    %p45 = por %p43, %p44
    %p46 = scmp.ne.s32.totalorder %s35, %s36
    %p47 = scmp.eq.s32.totalorder %s27, 0
    %p48 = por %p46, %p47
    %p49 = scmp.ne.s32.totalorder %s35, %s36
    %p50 = scmp.eq.s32.totalorder %s28, 1
    %p51 = por %p49, %p50
    %p53 = scmp.ne.s32.totalorder %s36, %s52
    %p54 = scmp.eq.s32.totalorder %s28, 0
    %p55 = por %p53, %p54
    %s56 = ssub.s32 %s22, %s29
    %p57 = scmp.eq.s32.totalorder %s56, 0
    %s59 = sadd.s32 %s58, 1
    %s60 = scalar_select %p57, %s58, %s59
    %p63 = pneg %p57
    %p64 = scmp.eq.s32.totalorder %s22, 1
    %p65 = por %p63, %p64
    %p66 = scmp.ne.s32.totalorder %s58, %s61
    %p67 = scmp.eq.s32.totalorder %s22, 0
    %p68 = por %p66, %p67
    %p69 = scmp.ne.s32.totalorder %s58, %s61
    %p70 = scmp.eq.s32.totalorder %s27, 1
    %p71 = por %p69, %p70
    %p72 = scmp.ne.s32.totalorder %s61, %s62
    %p73 = scmp.eq.s32.totalorder %s27, 0
    %p74 = por %p72, %p73
    %p75 = scmp.ne.s32.totalorder %s61, %s62
    %p76 = scmp.eq.s32.totalorder %s28, 1
    %p77 = por %p75, %p76
    %p79 = scmp.ne.s32.totalorder %s62, %s78
    %p80 = scmp.eq.s32.totalorder %s28, 0
    %p81 = por %p79, %p80
    %s83 = sadd.s32 %s82, 1
    %p86 = scmp.eq.s32.totalorder %s22, 1
    %p87 = scmp.ne.s32.totalorder %s82, %s84
    %p88 = scmp.eq.s32.totalorder %s22, 0
    %p89 = por %p87, %p88
    %p90 = scmp.ne.s32.totalorder %s82, %s84
    %p91 = scmp.eq.s32.totalorder %s27, 1
    %p92 = por %p90, %p91
    %p93 = scmp.ne.s32.totalorder %s84, %s85
    %p94 = scmp.eq.s32.totalorder %s27, 0
    %p95 = por %p93, %p94
    %p96 = scmp.ne.s32.totalorder %s84, %s85
    %p97 = scmp.eq.s32.totalorder %s28, 1
    %p98 = por %p96, %p97
    %p100 = scmp.ne.s32.totalorder %s85, %s99
    %p101 = scmp.eq.s32.totalorder %s28, 0
    %p102 = por %p100, %p101
    %s104 = sadd.s32 %s103, 1
    %p107 = scmp.eq.s32.totalorder %s22, 1
    %p108 = scmp.ne.s32.totalorder %s103, %s105
    %p109 = scmp.eq.s32.totalorder %s22, 0
    %p110 = por %p108, %p109
    %p111 = scmp.ne.s32.totalorder %s103, %s105
    %p112 = scmp.eq.s32.totalorder %s27, 1
    %p113 = por %p111, %p112
    %p114 = scmp.ne.s32.totalorder %s105, %s106
    %p115 = scmp.eq.s32.totalorder %s27, 0
    %p116 = por %p114, %p115
    %p117 = scmp.ne.s32.totalorder %s105, %s106
    %p118 = scmp.eq.s32.totalorder %s28, 1
    %p119 = por %p117, %p118
    %p121 = scmp.ne.s32.totalorder %s106, %s120
    %p122 = scmp.eq.s32.totalorder %s28, 0
    %p123 = por %p121, %p122
    %s125 = sadd.s32 %s124, 1
    %p128 = scmp.eq.s32.totalorder %s22, 1
    %p129 = scmp.ne.s32.totalorder %s124, %s126
    %p130 = scmp.eq.s32.totalorder %s22, 0
    %p131 = por %p129, %p130
    %p132 = scmp.ne.s32.totalorder %s124, %s126
    %p133 = scmp.eq.s32.totalorder %s27, 1
    %p134 = por %p132, %p133
    %p135 = scmp.ne.s32.totalorder %s126, %s127
    %p136 = scmp.eq.s32.totalorder %s27, 0
    %p137 = por %p135, %p136
    %p138 = scmp.ne.s32.totalorder %s126, %s127
    %p139 = scmp.eq.s32.totalorder %s28, 1
    %p140 = por %p138, %p139
    %p142 = scmp.ne.s32.totalorder %s127, %s141
    %p143 = scmp.eq.s32.totalorder %s28, 0
    %p144 = por %p142, %p143
    %s146 = sadd.s32 %s145, 1
    %p149 = scmp.eq.s32.totalorder %s22, 1
    %p150 = scmp.ne.s32.totalorder %s145, %s147
    %p151 = scmp.eq.s32.totalorder %s22, 0
    %p152 = por %p150, %p151
    %p153 = scmp.ne.s32.totalorder %s145, %s147
    %p154 = scmp.eq.s32.totalorder %s27, 1
    %p155 = por %p153, %p154
    %p156 = scmp.ne.s32.totalorder %s147, %s148
    %p157 = scmp.eq.s32.totalorder %s27, 0
    %p158 = por %p156, %p157
    %p159 = scmp.ne.s32.totalorder %s147, %s148
    %p160 = scmp.eq.s32.totalorder %s28, 1
    %p161 = por %p159, %p160
    %p163 = scmp.ne.s32.totalorder %s148, %s162
    %p164 = scmp.eq.s32.totalorder %s28, 0
    %p165 = por %p163, %p164
    %s167 = sadd.s32 %s166, 1
    %p170 = scmp.eq.s32.totalorder %s22, 1
    %p171 = scmp.ne.s32.totalorder %s166, %s168
    %p172 = scmp.eq.s32.totalorder %s22, 0
    %p173 = por %p171, %p172
    %p174 = scmp.ne.s32.totalorder %s166, %s168
    %p175 = scmp.eq.s32.totalorder %s27, 1
    %p176 = por %p174, %p175
    %p177 = scmp.ne.s32.totalorder %s168, %s169
    %p178 = scmp.eq.s32.totalorder %s27, 0
    %p179 = por %p177, %p178
    %p180 = scmp.ne.s32.totalorder %s168, %s169
    %p181 = scmp.eq.s32.totalorder %s28, 1
    %p182 = por %p180, %p181
    %p184 = scmp.ne.s32.totalorder %s169, %s183
    %p185 = scmp.eq.s32.totalorder %s28, 0
    %p186 = por %p184, %p185
    %s188 = sadd.s32 %s187, 1
    %p191 = scmp.eq.s32.totalorder %s22, 1
    %p192 = scmp.ne.s32.totalorder %s187, %s189
    %p193 = scmp.eq.s32.totalorder %s22, 0
    %p194 = por %p192, %p193
    %p195 = scmp.ne.s32.totalorder %s187, %s189
    %p196 = scmp.eq.s32.totalorder %s27, 1
    %p197 = por %p195, %p196
    %p198 = scmp.ne.s32.totalorder %s189, %s190
    %p199 = scmp.eq.s32.totalorder %s27, 0
    %p200 = por %p198, %p199
    %p201 = scmp.ne.s32.totalorder %s189, %s190
    %p202 = scmp.eq.s32.totalorder %s28, 1
    %p203 = por %p201, %p202
    %p205 = scmp.ne.s32.totalorder %s190, %s204
    %p206 = scmp.eq.s32.totalorder %s28, 0
    %p207 = por %p205, %p206
    %s209 = sadd.s32 %s208, 1
    %p212 = scmp.eq.s32.totalorder %s22, 1
    %p213 = scmp.ne.s32.totalorder %s208, %s210
    %p214 = scmp.eq.s32.totalorder %s22, 0
    %p215 = por %p213, %p214
    %p216 = scmp.ne.s32.totalorder %s208, %s210
    %p217 = scmp.eq.s32.totalorder %s27, 1
    %p218 = por %p216, %p217
    %p219 = scmp.ne.s32.totalorder %s210, %s211
    %p220 = scmp.eq.s32.totalorder %s27, 0
    %p221 = por %p219, %p220
    %p222 = scmp.ne.s32.totalorder %s210, %s211
    %p223 = scmp.eq.s32.totalorder %s28, 1
    %p224 = por %p222, %p223
    %p226 = scmp.ne.s32.totalorder %s211, %s225
    %p227 = scmp.eq.s32.totalorder %s28, 0
    %p228 = por %p226, %p227
    %s230 = sadd.s32 %s229, 1
    %p233 = scmp.eq.s32.totalorder %s22, 1
    %p234 = scmp.ne.s32.totalorder %s229, %s231
    %p235 = scmp.eq.s32.totalorder %s22, 0
    %p236 = por %p234, %p235
    %p237 = scmp.ne.s32.totalorder %s229, %s231
    %p238 = scmp.eq.s32.totalorder %s27, 1
    %p239 = por %p237, %p238
    %p240 = scmp.ne.s32.totalorder %s231, %s232
    %p241 = scmp.eq.s32.totalorder %s27, 0
    %p242 = por %p240, %p241
    %p243 = scmp.ne.s32.totalorder %s231, %s232
    %p244 = scmp.eq.s32.totalorder %s28, 1
    %p245 = por %p243, %p244
    %p247 = scmp.ne.s32.totalorder %s232, %s246
    %p248 = scmp.eq.s32.totalorder %s28, 0
    %p249 = por %p247, %p248
    %s251 = sadd.s32 %s250, 1
    %p254 = scmp.eq.s32.totalorder %s22, 1
    %p255 = scmp.ne.s32.totalorder %s250, %s252
    %p256 = scmp.eq.s32.totalorder %s22, 0
    %p257 = por %p255, %p256
    %p258 = scmp.ne.s32.totalorder %s250, %s252
    %p259 = scmp.eq.s32.totalorder %s27, 1
    %p260 = por %p258, %p259
    %p261 = scmp.ne.s32.totalorder %s252, %s253
    %p262 = scmp.eq.s32.totalorder %s27, 0
    %p263 = por %p261, %p262
    %p264 = scmp.ne.s32.totalorder %s252, %s253
    %p265 = scmp.eq.s32.totalorder %s28, 1
    %p266 = por %p264, %p265
    %p268 = scmp.ne.s32.totalorder %s253, %s267
    %p269 = scmp.eq.s32.totalorder %s28, 0
    %p270 = por %p268, %p269
    %s272 = sadd.s32 %s271, 1
    %p275 = scmp.eq.s32.totalorder %s22, 1
    %p276 = scmp.ne.s32.totalorder %s271, %s273
    %p277 = scmp.eq.s32.totalorder %s22, 0
    %p278 = por %p276, %p277
    %p279 = scmp.ne.s32.totalorder %s271, %s273
    %p280 = scmp.eq.s32.totalorder %s27, 1
    %p281 = por %p279, %p280
    %p282 = scmp.ne.s32.totalorder %s273, %s274
    %p283 = scmp.eq.s32.totalorder %s27, 0
    %p284 = por %p282, %p283
    %p285 = scmp.ne.s32.totalorder %s273, %s274
    %p286 = scmp.eq.s32.totalorder %s28, 1
    %p287 = por %p285, %p286
    %p289 = scmp.ne.s32.totalorder %s274, %s288
    %p290 = scmp.eq.s32.totalorder %s28, 0
    %p291 = por %p289, %p290
    %s293 = sadd.s32 %s292, 1
    %p296 = scmp.eq.s32.totalorder %s22, 1
    %p297 = scmp.ne.s32.totalorder %s292, %s294
    %p298 = scmp.eq.s32.totalorder %s22, 0
    %p299 = por %p297, %p298
    %p300 = scmp.ne.s32.totalorder %s292, %s294
    %p301 = scmp.eq.s32.totalorder %s27, 1
    %p302 = por %p300, %p301
    %p303 = scmp.ne.s32.totalorder %s294, %s295
    %p304 = scmp.eq.s32.totalorder %s27, 0
    %p305 = por %p303, %p304
    %p306 = scmp.ne.s32.totalorder %s294, %s295
    %p307 = scmp.eq.s32.totalorder %s28, 1
    %p308 = por %p306, %p307
    %p310 = scmp.ne.s32.totalorder %s295, %s309
    %p311 = scmp.eq.s32.totalorder %s28, 0
    %p312 = por %p310, %p311
    %s314 = sadd.s32 %s313, 1
    %p317 = scmp.eq.s32.totalorder %s22, 1
    %p318 = scmp.ne.s32.totalorder %s313, %s315
    %p319 = scmp.eq.s32.totalorder %s22, 0
    %p320 = por %p318, %p319
    %p321 = scmp.ne.s32.totalorder %s313, %s315
    %p322 = scmp.eq.s32.totalorder %s27, 1
    %p323 = por %p321, %p322
    %p324 = scmp.ne.s32.totalorder %s315, %s316
    %p325 = scmp.eq.s32.totalorder %s27, 0
    %p326 = por %p324, %p325
    %p327 = scmp.ne.s32.totalorder %s315, %s316
    %p328 = scmp.eq.s32.totalorder %s28, 1
    %p329 = por %p327, %p328
    %p331 = scmp.ne.s32.totalorder %s316, %s330
    %p332 = scmp.eq.s32.totalorder %s28, 0
    %p333 = por %p331, %p332
    %s335 = sadd.s32 %s334, 1
    %p338 = scmp.eq.s32.totalorder %s22, 1
    %p339 = scmp.ne.s32.totalorder %s334, %s336
    %p340 = scmp.eq.s32.totalorder %s22, 0
    %p341 = por %p339, %p340
    %p342 = scmp.ne.s32.totalorder %s334, %s336
    %p343 = scmp.eq.s32.totalorder %s27, 1
    %p344 = por %p342, %p343
    %p345 = scmp.ne.s32.totalorder %s336, %s337
    %p346 = scmp.eq.s32.totalorder %s27, 0
    %p347 = por %p345, %p346
    %p348 = scmp.ne.s32.totalorder %s336, %s337
    %p349 = scmp.eq.s32.totalorder %s28, 1
    %p350 = por %p348, %p349
    %p352 = scmp.ne.s32.totalorder %s337, %s351
    %p353 = scmp.eq.s32.totalorder %s28, 0
    %p354 = por %p352, %p353
    %s356 = sadd.s32 %s355, 1
    %p359 = scmp.eq.s32.totalorder %s22, 1
    %p360 = scmp.ne.s32.totalorder %s355, %s357
    %p361 = scmp.eq.s32.totalorder %s22, 0
    %p362 = por %p360, %p361
    %p363 = scmp.ne.s32.totalorder %s355, %s357
    %p364 = scmp.eq.s32.totalorder %s27, 1
    %p365 = por %p363, %p364
    %p366 = scmp.ne.s32.totalorder %s357, %s358
    %p367 = scmp.eq.s32.totalorder %s27, 0
    %p368 = por %p366, %p367
    %p369 = scmp.ne.s32.totalorder %s357, %s358
    %p370 = scmp.eq.s32.totalorder %s28, 1
    %p371 = por %p369, %p370
    %p373 = scmp.ne.s32.totalorder %s358, %s372
    %p374 = scmp.eq.s32.totalorder %s28, 0
    %p375 = por %p373, %p374
    %s376 = ssub.s32 %s22, %s29
    %p377 = scmp.eq.s32.totalorder %s376, 0
    %s379 = sadd.s32 %s378, 1
    %s380 = scalar_select %p377, %s378, %s379
    %p383 = pneg %p377
    %p384 = scmp.eq.s32.totalorder %s22, 1
    %p385 = por %p383, %p384
    %p386 = scmp.ne.s32.totalorder %s378, %s381
    %p387 = scmp.eq.s32.totalorder %s22, 0
    %p388 = por %p386, %p387
    %p389 = scmp.ne.s32.totalorder %s378, %s381
    %p390 = scmp.eq.s32.totalorder %s27, 1
    %p391 = por %p389, %p390
    %p392 = scmp.ne.s32.totalorder %s381, %s382
    %p393 = scmp.eq.s32.totalorder %s27, 0
    %p394 = por %p392, %p393
    %p395 = scmp.ne.s32.totalorder %s381, %s382
    %p396 = scmp.eq.s32.totalorder %s28, 1
    %p397 = por %p395, %p396
    %p399 = scmp.ne.s32.totalorder %s382, %s398
    %p400 = scmp.eq.s32.totalorder %s28, 0
    %p401 = por %p399, %p400
    %p402 = scmp.le.s32.totalorder 1, %s22
    %p403 = scmp.lt.s32.totalorder %s22, 3
    %p404 = pnand %p402, %p403
    %p405 = pneg %p404
    // Predicated region
    $region9: #{feature_layer_forward.1} parent=5 // pred_check
      _
    $region10: #{feature_layer_forward.1} parent=5 // pred_check_branch
      %407 = sbr.rel (%p404) target = $region12
    $region11: #{feature_layer_forward.1} parent=5 // pred_region
      %s408 = ssub.s32 %s22, 1
      // Predicated region
      $region13: #{feature_layer_forward.1} parent=11 // pred_check
        %p409 = pneg %p95
      $region14: #{feature_layer_forward.1} parent=11 // pred_check_branch
        %411 = sbr.rel (%p409) target = $region16
      $region15: #{feature_layer_forward.1} parent=11 // pred_region
        _
      $region16: #{feature_layer_forward.1} parent=11 // pred_fallthru
        _
      // Predicated region
      $region17: #{feature_layer_forward.1} parent=11 // pred_check
        %p412 = pneg %p116
      $region18: #{feature_layer_forward.1} parent=11 // pred_check_branch
        %414 = sbr.rel (%p412) target = $region20
      $region19: #{feature_layer_forward.1} parent=11 // pred_region
        _
      $region20: #{feature_layer_forward.1} parent=11 // pred_fallthru
        _
      // Predicated region
      $region21: #{feature_layer_forward.1} parent=11 // pred_check
        %p415 = pneg %p137
      $region22: #{feature_layer_forward.1} parent=11 // pred_check_branch
        %417 = sbr.rel (%p415) target = $region24
      $region23: #{feature_layer_forward.1} parent=11 // pred_region
        _
      $region24: #{feature_layer_forward.1} parent=11 // pred_fallthru
        _
      // Predicated region
      $region25: #{feature_layer_forward.1} parent=11 // pred_check
        %p418 = pneg %p158
      $region26: #{feature_layer_forward.1} parent=11 // pred_check_branch
        %420 = sbr.rel (%p418) target = $region28
      $region27: #{feature_layer_forward.1} parent=11 // pred_region
        _
      $region28: #{feature_layer_forward.1} parent=11 // pred_fallthru
        _
      // Predicated region
      $region29: #{feature_layer_forward.1} parent=11 // pred_check
        %p421 = pneg %p179
      $region30: #{feature_layer_forward.1} parent=11 // pred_check_branch
        %423 = sbr.rel (%p421) target = $region32
      $region31: #{feature_layer_forward.1} parent=11 // pred_region
        _
      $region32: #{feature_layer_forward.1} parent=11 // pred_fallthru
        _
      // Predicated region
      $region33: #{feature_layer_forward.1} parent=11 // pred_check
        %p424 = pneg %p200
      $region34: #{feature_layer_forward.1} parent=11 // pred_check_branch
        %426 = sbr.rel (%p424) target = $region36
      $region35: #{feature_layer_forward.1} parent=11 // pred_region
        _
      $region36: #{feature_layer_forward.1} parent=11 // pred_fallthru
        _
      // Predicated region
      $region37: #{feature_layer_forward.1} parent=11 // pred_check
        %p427 = pneg %p221
      $region38: #{feature_layer_forward.1} parent=11 // pred_check_branch
        %429 = sbr.rel (%p427) target = $region40
      $region39: #{feature_layer_forward.1} parent=11 // pred_region
        _
      $region40: #{feature_layer_forward.1} parent=11 // pred_fallthru
        _
      // Predicated region
      $region41: #{feature_layer_forward.1} parent=11 // pred_check
        %p430 = pneg %p242
      $region42: #{feature_layer_forward.1} parent=11 // pred_check_branch
        %432 = sbr.rel (%p430) target = $region44
      $region43: #{feature_layer_forward.1} parent=11 // pred_region
        _
      $region44: #{feature_layer_forward.1} parent=11 // pred_fallthru
        _
      // Predicated region
      $region45: #{feature_layer_forward.1} parent=11 // pred_check
        %p433 = pneg %p263
      $region46: #{feature_layer_forward.1} parent=11 // pred_check_branch
        %435 = sbr.rel (%p433) target = $region48
      $region47: #{feature_layer_forward.1} parent=11 // pred_region
        _
      $region48: #{feature_layer_forward.1} parent=11 // pred_fallthru
        _
      // Predicated region
      $region49: #{feature_layer_forward.1} parent=11 // pred_check
        %p436 = pneg %p284
      $region50: #{feature_layer_forward.1} parent=11 // pred_check_branch
        %438 = sbr.rel (%p436) target = $region52
      $region51: #{feature_layer_forward.1} parent=11 // pred_region
        _
      $region52: #{feature_layer_forward.1} parent=11 // pred_fallthru
        _
      // Predicated region
      $region53: #{feature_layer_forward.1} parent=11 // pred_check
        %p439 = pneg %p305
      $region54: #{feature_layer_forward.1} parent=11 // pred_check_branch
        %441 = sbr.rel (%p439) target = $region56
      $region55: #{feature_layer_forward.1} parent=11 // pred_region
        _
      $region56: #{feature_layer_forward.1} parent=11 // pred_fallthru
        _
      // Predicated region
      $region57: #{feature_layer_forward.1} parent=11 // pred_check
        %p442 = pneg %p326
      $region58: #{feature_layer_forward.1} parent=11 // pred_check_branch
        %444 = sbr.rel (%p442) target = $region60
      $region59: #{feature_layer_forward.1} parent=11 // pred_region
        _
      $region60: #{feature_layer_forward.1} parent=11 // pred_fallthru
        _
      // Predicated region
      $region61: #{feature_layer_forward.1} parent=11 // pred_check
        %p445 = pneg %p347
      $region62: #{feature_layer_forward.1} parent=11 // pred_check_branch
        %447 = sbr.rel (%p445) target = $region64
      $region63: #{feature_layer_forward.1} parent=11 // pred_region
        _
      $region64: #{feature_layer_forward.1} parent=11 // pred_fallthru
        _
      // Predicated region
      $region65: #{feature_layer_forward.1} parent=11 // pred_check
        %p448 = pneg %p368
      $region66: #{feature_layer_forward.1} parent=11 // pred_check_branch
        %450 = sbr.rel (%p448) target = $region68
      $region67: #{feature_layer_forward.1} parent=11 // pred_region
        _
      $region68: #{feature_layer_forward.1} parent=11 // pred_fallthru
        _
    $region12: #{feature_layer_forward.1} parent=5 // pred_fallthru
      _
    %p451 = scmp.lt.s32.totalorder %s22, 2
    // Predicated region
    $region69: #{feature_layer_forward.1} parent=5 // pred_check
      %p452 = pneg %p451
    $region70: #{feature_layer_forward.1} parent=5 // pred_check_branch
      %454 = sbr.rel (%p452) target = $region72
    $region71: #{feature_layer_forward.1} parent=5 // pred_region
      // Predicated region
      $region73: #{feature_layer_forward.1} parent=71 // pred_check
        %p455 = pneg %p42
      $region74: #{feature_layer_forward.1} parent=71 // pred_check_branch
        %457 = sbr.rel (%p455) target = $region76
      $region75: #{feature_layer_forward.1} parent=71 // pred_region
        %s458 = smul.u32 16, %s22
        %p459 = scmp.lt.s32.totalorder %s458, 31
        %s460 = scalar_select %p459, %s458, 31
        %s461 = smul.addr %s460, 8
        %s462 = scalar_lea.vmem %s0, %s461
        %s463 = smul.u32 16, %s22
      $region76: #{feature_layer_forward.1} parent=71 // pred_fallthru
        _
      // Predicated region
      $region77: #{feature_layer_forward.1} parent=71 // pred_check
        %p464 = pneg %p68
      $region78: #{feature_layer_forward.1} parent=71 // pred_check_branch
        %466 = sbr.rel (%p464) target = $region80
      $region79: #{feature_layer_forward.1} parent=71 // pred_region
        %s467 = smul.u32 16, %s22
        %p468 = scmp.lt.s32.totalorder %s467, 31
        %s469 = scalar_select %p468, %s467, 31
        %s470 = smul.addr %s469, 8
        %s471 = scalar_lea.vmem %s1, %s470
        %s472 = smul.u32 16, %s22
      $region80: #{feature_layer_forward.1} parent=71 // pred_fallthru
        _
    $region72: #{feature_layer_forward.1} parent=5 // pred_fallthru
      _
    %p473 = scmp.le.s32.totalorder 1, %s22
    %p474 = scmp.lt.s32.totalorder %s22, 3
    %p475 = pnand %p473, %p474
    %p476 = pneg %p475
    // Predicated region
    $region81: #{feature_layer_forward.1} parent=5 // pred_check
      _
    $region82: #{feature_layer_forward.1} parent=5 // pred_check_branch
      %478 = sbr.rel (%p475) target = $region84
    $region83: #{feature_layer_forward.1} parent=5 // pred_region
      %s479 = ssub.s32 %s22, 1
      %s480 = smul.u32 16, %s27
      %p481 = scmp.lt.s32.totalorder %s480, 31
      %s482 = scalar_select %p481, %s480, 31
      %s483 = smul.addr %s482, 8
      %s484 = scalar_lea.vmem %s0, %s483
      %p485 = pneg %p48
      %p486 = pneg %p45
      %s487 = smul.u32 16, %s27
      %p488 = scmp.lt.s32.totalorder %s487, 31
      %s489 = scalar_select %p488, %s487, 31
      %s490 = smul.addr %s489, 8
      %s491 = scalar_lea.vmem %s1, %s490
      %p492 = pneg %p74
      %p493 = pneg %p71
      %p494 = pneg %p95
      %p495 = pneg %p92
      %p496 = pneg %p116
      %p497 = pneg %p113
      %p498 = pneg %p137
      %p499 = pneg %p134
      %p500 = pneg %p158
      %p501 = pneg %p155
      %p502 = pneg %p179
      %p503 = pneg %p176
      %p504 = pneg %p200
      %p505 = pneg %p197
      %p506 = pneg %p221
      %p507 = pneg %p218
      %p508 = pneg %p242
      %p509 = pneg %p239
      %p510 = pneg %p263
      %p511 = pneg %p260
      %p512 = pneg %p284
      %p513 = pneg %p281
      %p514 = pneg %p305
      %p515 = pneg %p302
      %p516 = pneg %p326
      %p517 = pneg %p323
      %p518 = pneg %p347
      %p519 = pneg %p344
      %p520 = pneg %p368
      %p521 = pneg %p365
      %p522 = pneg %p394
      %p523 = pneg %p391
      %s524 = smul.u32 16, %s27
      %p525 = scmp.lt.s32.totalorder %s524, 31
      %s526 = scalar_select %p525, %s524, 31
      %s527 = smul.addr %s526, 8
      %s528 = scalar_lea.vmem %s16, %s527
      %s529 = smul.u32 16, %s27
      %p530 = scmp.lt.s32.totalorder %s529, 31
      %s531 = scalar_select %p530, %s529, 31
      %s532 = smul.addr %s531, 8
      %s533 = scalar_lea.vmem %s0, %s532
      %s534 = smul.u32 16, %s27
      %s535 = smul.u32 16, %s27
      %p536 = scmp.lt.s32.totalorder %s535, 31
      %s537 = scalar_select %p536, %s535, 31
      %s538 = smul.addr %s537, 8
      %s539 = scalar_lea.vmem %s1, %s538
      %s540 = smul.u32 16, %s27
      %s541 = smul.u32 16, %s27
      %p542 = scmp.lt.s32.totalorder %s541, 31
      %s543 = scalar_select %p542, %s541, 31
      %s544 = smul.addr %s543, 8
      %s545 = scalar_lea.vmem %s16, %s544
      %s546 = smul.u32 16, %s27
      %v547 = vld [vmem:[%s533] sm:$0xff]
      %v548 = vld [vmem:[%s533 + $0x8] sm:$0xff]
      %v549 = vld [vmem:[%s533 + $0x10] sm:$0xff]
      %v550 = vld [vmem:[%s533 + $0x18] sm:$0xff]
      %v551 = vld [vmem:[%s533 + $0x20] sm:$0xff]
      %v552 = vld [vmem:[%s533 + $0x28] sm:$0xff]
      %v553 = vld [vmem:[%s533 + $0x30] sm:$0xff]
      %v554 = vld [vmem:[%s533 + $0x38] sm:$0xff]
      %v555 = vld [vmem:[%s533 + $0x40] sm:$0xff]
      %v556 = vld [vmem:[%s533 + $0x48] sm:$0xff]
      %v557 = vld [vmem:[%s533 + $0x50] sm:$0xff]
      %v558 = vld [vmem:[%s533 + $0x58] sm:$0xff]
      %v559 = vld [vmem:[%s533 + $0x60] sm:$0xff]
      %v560 = vld [vmem:[%s533 + $0x68] sm:$0xff]
      %v561 = vld [vmem:[%s533 + $0x70] sm:$0xff]
      %v562 = vld [vmem:[%s533 + $0x78] sm:$0xff]
      %v563 = vld [vmem:[%s539] sm:$0xff]
      %v564 = vld [vmem:[%s539 + $0x8] sm:$0xff]
      %v565 = vld [vmem:[%s539 + $0x10] sm:$0xff]
      %v566 = vld [vmem:[%s539 + $0x18] sm:$0xff]
      %v567 = vld [vmem:[%s539 + $0x20] sm:$0xff]
      %v568 = vld [vmem:[%s539 + $0x28] sm:$0xff]
      %v569 = vld [vmem:[%s539 + $0x30] sm:$0xff]
      %v570 = vld [vmem:[%s539 + $0x38] sm:$0xff]
      %v571 = vld [vmem:[%s539 + $0x40] sm:$0xff]
      %v572 = vld [vmem:[%s539 + $0x48] sm:$0xff]
      %v573 = vld [vmem:[%s539 + $0x50] sm:$0xff]
      %v574 = vld [vmem:[%s539 + $0x58] sm:$0xff]
      %v575 = vld [vmem:[%s539 + $0x60] sm:$0xff]
      %v576 = vld [vmem:[%s539 + $0x68] sm:$0xff]
      %v577 = vld [vmem:[%s539 + $0x70] sm:$0xff]
      %v578 = vld [vmem:[%s539 + $0x78] sm:$0xff]
      %v579 = vld [vmem:[%s2] sm:$0xff]
      %v580 = vld [vmem:[%s2 + $0x8] sm:$0xff]
      %v581 = vld [vmem:[%s2 + $0x10] sm:$0xff]
      %v582 = vld [vmem:[%s2 + $0x18] sm:$0xff]
      %v583 = vld [vmem:[%s2 + $0x20] sm:$0xff]
      %v584 = vld [vmem:[%s2 + $0x28] sm:$0xff]
      %v585 = vld [vmem:[%s3] sm:$0x1]
      %v587 = vlaneseq
      %v588 = vshrl.u32 %v587, 7
      %v589 = vsub.s32 0, %v588
      %v590 = vrot.slane %v585, %v589
      %vm592 = vcmask 392192
      %v594 = vsel %vm592, %v547, 0
      %v597 = vsel %vm592, %v548, 0
      %v600 = vsel %vm592, %v549, 0
      %v603 = vsel %vm592, %v550, 0
      %v606 = vsel %vm592, %v551, 0
      %v609 = vsel %vm592, %v552, 0
      %v612 = vsel %vm592, %v553, 0
      %v615 = vsel %vm592, %v554, 0
      %v618 = vsel %vm592, %v555, 0
      %v621 = vsel %vm592, %v556, 0
      %v624 = vsel %vm592, %v557, 0
      %v627 = vsel %vm592, %v558, 0
      %v630 = vsel %vm592, %v559, 0
      %v633 = vsel %vm592, %v560, 0
      %v636 = vsel %vm592, %v561, 0
      %v639 = vsel %vm592, %v562, 0
      %641 = vmatprep.subr.mxu0 0.0
      %642 = vmatpush1.msra.mxu0 0.0
      %643 = vmatprep.subr.mxu0 0.0
      %644 = vmatpush1.msra.mxu0 0.0
      %645 = vmatprep.subr.mxu0 0.0
      %646 = vmatpush1.msra.mxu0 0.0
      %647 = vmatprep.subr.mxu0 0.0
      %648 = vmatpush1.msra.mxu0 0.0
      %649 = vmatprep.subr.mxu0 0.0
      %650 = vmatpush1.msra.mxu0 0.0
      %651 = vmatprep.subr.mxu0 0.0
      %652 = vmatpush1.msra.mxu0 0.0
      %653 = vmatprep.subr.mxu0 0.0
      %654 = vmatpush1.msra.mxu0 0.0
      %655 = vmatprep.subr.mxu0 0.0
      %656 = vmatpush1.msra.mxu0 0.0
      %657 = vmatprep.subr.mxu0 0.0
      %658 = vmatpush1.msra.mxu0 0.0
      %659 = vmatprep.subr.mxu0 0.0
      %660 = vmatpush1.msra.mxu0 0.0
      %661 = vmatprep.subr.mxu0 0.0
      %662 = vmatpush1.msra.mxu0 %v584
      %663 = vmatprep.subr.mxu0 0.0
      %664 = vmatpush1.msra.mxu0 %v583
      %665 = vmatprep.subr.mxu0 0.0
      %666 = vmatpush1.msra.mxu0 %v582
      %667 = vmatprep.subr.mxu0 0.0
      %668 = vmatpush1.msra.mxu0 %v581
      %669 = vmatprep.subr.mxu0 0.0
      %670 = vmatpush1.msra.mxu0 %v580
      %671 = vmatprep.subr.mxu0 0.0
      %672 = vmatpush1.msra.mxu0 %v579
      %673 = vmatprep.subr.mxu0 0.0
      %674 = vmatpush2.msra.mxu0 0.0
      %675 = vmatprep.subr.mxu0 0.0
      %676 = vmatpush2.msra.mxu0 0.0
      %677 = vmatprep.subr.mxu0 0.0
      %678 = vmatpush2.msra.mxu0 0.0
      %679 = vmatprep.subr.mxu0 0.0
      %680 = vmatpush2.msra.mxu0 0.0
      %681 = vmatprep.subr.mxu0 0.0
      %682 = vmatpush2.msra.mxu0 0.0
      %683 = vmatprep.subr.mxu0 0.0
      %684 = vmatpush2.msra.mxu0 0.0
      %685 = vmatprep.subr.mxu0 0.0
      %686 = vmatpush2.msra.mxu0 0.0
      %687 = vmatprep.subr.mxu0 0.0
      %688 = vmatpush2.msra.mxu0 0.0
      %689 = vmatprep.subr.mxu0 0.0
      %690 = vmatpush2.msra.mxu0 0.0
      %691 = vmatprep.subr.mxu0 0.0
      %692 = vmatpush2.msra.mxu0 0.0
      %693 = vmatprep.subr.mxu0 0.0
      %694 = vmatpush2.msra.mxu0 0.0
      %695 = vmatprep.subr.mxu0 0.0
      %696 = vmatpush2.msra.mxu0 0.0
      %697 = vmatprep.subr.mxu0 0.0
      %698 = vmatpush2.msra.mxu0 0.0
      %699 = vmatprep.subr.mxu0 0.0
      %700 = vmatpush2.msra.mxu0 0.0
      %701 = vmatprep.subr.mxu0 0.0
      %702 = vmatpush2.msra.mxu0 0.0
      %703 = vmatprep.subr.mxu0 0.0
      %704 = vmatpush2.msra.mxu0 0.0
      %705 = vmatprep.mubr.f32.mxu0 0.0
      %706 = vmatmul.mubr.f32.gmra.mxu0 %v594
      %v707 = vpop.f32.mrf.mxu0
      %v708 = vadd.f32 %v590, %v707
      %v709 = vpop.f32.mrf.mxu0
      %710 = vmatprep.mubr.f32.mxu0 0.0
      %711 = vmatmul.mubr.f32.gmra.mxu0 %v597
      %v712 = vpop.f32.mrf.mxu0
      %v713 = vadd.f32 %v590, %v712
      %v714 = vpop.f32.mrf.mxu0
      %715 = vmatprep.mubr.f32.mxu0 0.0
      %716 = vmatmul.mubr.f32.gmra.mxu0 %v600
      %v717 = vpop.f32.mrf.mxu0
      %v718 = vadd.f32 %v590, %v717
      %v719 = vpop.f32.mrf.mxu0
      %720 = vmatprep.mubr.f32.mxu0 0.0
      %721 = vmatmul.mubr.f32.gmra.mxu0 %v603
      %v722 = vpop.f32.mrf.mxu0
      %v723 = vadd.f32 %v590, %v722
      %v724 = vpop.f32.mrf.mxu0
      %725 = vmatprep.mubr.f32.mxu0 0.0
      %726 = vmatmul.mubr.f32.gmra.mxu0 %v606
      %v727 = vpop.f32.mrf.mxu0
      %v728 = vadd.f32 %v590, %v727
      %v729 = vpop.f32.mrf.mxu0
      %730 = vmatprep.mubr.f32.mxu0 0.0
      %731 = vmatmul.mubr.f32.gmra.mxu0 %v609
      %v732 = vpop.f32.mrf.mxu0
      %v733 = vadd.f32 %v590, %v732
      %v734 = vpop.f32.mrf.mxu0
      %735 = vmatprep.mubr.f32.mxu0 0.0
      %736 = vmatmul.mubr.f32.gmra.mxu0 %v612
      %v737 = vpop.f32.mrf.mxu0
      %v738 = vadd.f32 %v590, %v737
      %v739 = vpop.f32.mrf.mxu0
      %740 = vmatprep.mubr.f32.mxu0 0.0
      %741 = vmatmul.mubr.f32.gmra.mxu0 %v615
      %v742 = vpop.f32.mrf.mxu0
      %v743 = vadd.f32 %v590, %v742
      %v744 = vpop.f32.mrf.mxu0
      %745 = vmatprep.mubr.f32.mxu0 0.0
      %746 = vmatmul.mubr.f32.gmra.mxu0 %v618
      %v747 = vpop.f32.mrf.mxu0
      %v748 = vadd.f32 %v590, %v747
      %v749 = vpop.f32.mrf.mxu0
      %750 = vmatprep.mubr.f32.mxu0 0.0
      %751 = vmatmul.mubr.f32.gmra.mxu0 %v621
      %v752 = vpop.f32.mrf.mxu0
      %v753 = vadd.f32 %v590, %v752
      %v754 = vpop.f32.mrf.mxu0
      %755 = vmatprep.mubr.f32.mxu0 0.0
      %756 = vmatmul.mubr.f32.gmra.mxu0 %v624
      %v757 = vpop.f32.mrf.mxu0
      %v758 = vadd.f32 %v590, %v757
      %v759 = vpop.f32.mrf.mxu0
      %760 = vmatprep.mubr.f32.mxu0 0.0
      %761 = vmatmul.mubr.f32.gmra.mxu0 %v627
      %v762 = vpop.f32.mrf.mxu0
      %v763 = vadd.f32 %v590, %v762
      %v764 = vpop.f32.mrf.mxu0
      %765 = vmatprep.mubr.f32.mxu0 0.0
      %766 = vmatmul.mubr.f32.gmra.mxu0 %v630
      %v767 = vpop.f32.mrf.mxu0
      %v768 = vadd.f32 %v590, %v767
      %v769 = vpop.f32.mrf.mxu0
      %770 = vmatprep.mubr.f32.mxu0 0.0
      %771 = vmatmul.mubr.f32.gmra.mxu0 %v633
      %v772 = vpop.f32.mrf.mxu0
      %v773 = vadd.f32 %v590, %v772
      %v774 = vpop.f32.mrf.mxu0
      %775 = vmatprep.mubr.f32.mxu0 0.0
      %776 = vmatmul.mubr.f32.gmra.mxu0 %v636
      %v777 = vpop.f32.mrf.mxu0
      %v778 = vadd.f32 %v590, %v777
      %v779 = vpop.f32.mrf.mxu0
      %780 = vmatprep.mubr.f32.mxu0 0.0
      %781 = vmatmul.mubr.f32.gmra.mxu0 %v639
      %v782 = vpop.f32.mrf.mxu0
      %v783 = vadd.f32 %v590, %v782
      %v784 = vpop.f32.mrf.mxu0
      %785 = vdwg.mxu0
      %v786 = vmax.f32 %v708, 0.0
      %v787 = vmax.f32 %v713, 0.0
      %v788 = vmax.f32 %v718, 0.0
      %v789 = vmax.f32 %v723, 0.0
      %v790 = vmax.f32 %v728, 0.0
      %v791 = vmax.f32 %v733, 0.0
      %v792 = vmax.f32 %v738, 0.0
      %v793 = vmax.f32 %v743, 0.0
      %v794 = vmax.f32 %v748, 0.0
      %v795 = vmax.f32 %v753, 0.0
      %v796 = vmax.f32 %v758, 0.0
      %v797 = vmax.f32 %v763, 0.0
      %v798 = vmax.f32 %v768, 0.0
      %v799 = vmax.f32 %v773, 0.0
      %v800 = vmax.f32 %v778, 0.0
      %v801 = vmax.f32 %v783, 0.0
      %v802 = vld [vmem:[%s4] sm:$0xff]
      %v803 = vld [vmem:[%s4 + $0x8] sm:$0xff]
      %v804 = vld [vmem:[%s4 + $0x10] sm:$0xff]
      %v805 = vld [vmem:[%s4 + $0x18] sm:$0xff]
      %v806 = vld [vmem:[%s4 + $0x20] sm:$0xff]
      %v807 = vld [vmem:[%s4 + $0x28] sm:$0xff]
      %v808 = vld [vmem:[%s4 + $0x30] sm:$0xff]
      %v809 = vld [vmem:[%s4 + $0x38] sm:$0xff]
      %v810 = vld [vmem:[%s5] sm:$0x1]
      %v812 = vlaneseq
      %v813 = vshrl.u32 %v812, 7
      %v814 = vsub.s32 0, %v813
      %v815 = vrot.slane %v810, %v814
      %vm817 = vcmask 523264
      %v819 = vsel %vm817, %v786, 0
      %v822 = vsel %vm817, %v787, 0
      %v825 = vsel %vm817, %v788, 0
      %v828 = vsel %vm817, %v789, 0
      %v831 = vsel %vm817, %v790, 0
      %v834 = vsel %vm817, %v791, 0
      %v837 = vsel %vm817, %v792, 0
      %v840 = vsel %vm817, %v793, 0
      %v843 = vsel %vm817, %v794, 0
      %v846 = vsel %vm817, %v795, 0
      %v849 = vsel %vm817, %v796, 0
      %v852 = vsel %vm817, %v797, 0
      %v855 = vsel %vm817, %v798, 0
      %v858 = vsel %vm817, %v799, 0
      %v861 = vsel %vm817, %v800, 0
      %v864 = vsel %vm817, %v801, 0
      %866 = vmatprep.subr.mxu0 0.0
      %867 = vmatpush1.msra.mxu0 0.0
      %868 = vmatprep.subr.mxu0 0.0
      %869 = vmatpush1.msra.mxu0 0.0
      %870 = vmatprep.subr.mxu0 0.0
      %871 = vmatpush1.msra.mxu0 0.0
      %872 = vmatprep.subr.mxu0 0.0
      %873 = vmatpush1.msra.mxu0 0.0
      %874 = vmatprep.subr.mxu0 0.0
      %875 = vmatpush1.msra.mxu0 0.0
      %876 = vmatprep.subr.mxu0 0.0
      %877 = vmatpush1.msra.mxu0 0.0
      %878 = vmatprep.subr.mxu0 0.0
      %879 = vmatpush1.msra.mxu0 0.0
      %880 = vmatprep.subr.mxu0 0.0
      %881 = vmatpush1.msra.mxu0 0.0
      %882 = vmatprep.subr.mxu0 0.0
      %883 = vmatpush1.msra.mxu0 %v809
      %884 = vmatprep.subr.mxu0 0.0
      %885 = vmatpush1.msra.mxu0 %v808
      %886 = vmatprep.subr.mxu0 0.0
      %887 = vmatpush1.msra.mxu0 %v807
      %888 = vmatprep.subr.mxu0 0.0
      %889 = vmatpush1.msra.mxu0 %v806
      %890 = vmatprep.subr.mxu0 0.0
      %891 = vmatpush1.msra.mxu0 %v805
      %892 = vmatprep.subr.mxu0 0.0
      %893 = vmatpush1.msra.mxu0 %v804
      %894 = vmatprep.subr.mxu0 0.0
      %895 = vmatpush1.msra.mxu0 %v803
      %896 = vmatprep.subr.mxu0 0.0
      %897 = vmatpush1.msra.mxu0 %v802
      %898 = vmatprep.subr.mxu0 0.0
      %899 = vmatpush2.msra.mxu0 0.0
      %900 = vmatprep.subr.mxu0 0.0
      %901 = vmatpush2.msra.mxu0 0.0
      %902 = vmatprep.subr.mxu0 0.0
      %903 = vmatpush2.msra.mxu0 0.0
      %904 = vmatprep.subr.mxu0 0.0
      %905 = vmatpush2.msra.mxu0 0.0
      %906 = vmatprep.subr.mxu0 0.0
      %907 = vmatpush2.msra.mxu0 0.0
      %908 = vmatprep.subr.mxu0 0.0
      %909 = vmatpush2.msra.mxu0 0.0
      %910 = vmatprep.subr.mxu0 0.0
      %911 = vmatpush2.msra.mxu0 0.0
      %912 = vmatprep.subr.mxu0 0.0
      %913 = vmatpush2.msra.mxu0 0.0
      %914 = vmatprep.subr.mxu0 0.0
      %915 = vmatpush2.msra.mxu0 0.0
      %916 = vmatprep.subr.mxu0 0.0
      %917 = vmatpush2.msra.mxu0 0.0
      %918 = vmatprep.subr.mxu0 0.0
      %919 = vmatpush2.msra.mxu0 0.0
      %920 = vmatprep.subr.mxu0 0.0
      %921 = vmatpush2.msra.mxu0 0.0
      %922 = vmatprep.subr.mxu0 0.0
      %923 = vmatpush2.msra.mxu0 0.0
      %924 = vmatprep.subr.mxu0 0.0
      %925 = vmatpush2.msra.mxu0 0.0
      %926 = vmatprep.subr.mxu0 0.0
      %927 = vmatpush2.msra.mxu0 0.0
      %928 = vmatprep.subr.mxu0 0.0
      %929 = vmatpush2.msra.mxu0 0.0
      %930 = vmatprep.mubr.f32.mxu0 0.0
      %931 = vmatmul.mubr.f32.gmra.mxu0 %v819
      %v932 = vpop.f32.mrf.mxu0
      %v933 = vadd.f32 %v815, %v932
      %v934 = vpop.f32.mrf.mxu0
      %935 = vmatprep.mubr.f32.mxu0 0.0
      %936 = vmatmul.mubr.f32.gmra.mxu0 %v822
      %v937 = vpop.f32.mrf.mxu0
      %v938 = vadd.f32 %v815, %v937
      %v939 = vpop.f32.mrf.mxu0
      %940 = vmatprep.mubr.f32.mxu0 0.0
      %941 = vmatmul.mubr.f32.gmra.mxu0 %v825
      %v942 = vpop.f32.mrf.mxu0
      %v943 = vadd.f32 %v815, %v942
      %v944 = vpop.f32.mrf.mxu0
      %945 = vmatprep.mubr.f32.mxu0 0.0
      %946 = vmatmul.mubr.f32.gmra.mxu0 %v828
      %v947 = vpop.f32.mrf.mxu0
      %v948 = vadd.f32 %v815, %v947
      %v949 = vpop.f32.mrf.mxu0
      %950 = vmatprep.mubr.f32.mxu0 0.0
      %951 = vmatmul.mubr.f32.gmra.mxu0 %v831
      %v952 = vpop.f32.mrf.mxu0
      %v953 = vadd.f32 %v815, %v952
      %v954 = vpop.f32.mrf.mxu0
      %955 = vmatprep.mubr.f32.mxu0 0.0
      %956 = vmatmul.mubr.f32.gmra.mxu0 %v834
      %v957 = vpop.f32.mrf.mxu0
      %v958 = vadd.f32 %v815, %v957
      %v959 = vpop.f32.mrf.mxu0
      %960 = vmatprep.mubr.f32.mxu0 0.0
      %961 = vmatmul.mubr.f32.gmra.mxu0 %v837
      %v962 = vpop.f32.mrf.mxu0
      %v963 = vadd.f32 %v815, %v962
      %v964 = vpop.f32.mrf.mxu0
      %965 = vmatprep.mubr.f32.mxu0 0.0
      %966 = vmatmul.mubr.f32.gmra.mxu0 %v840
      %v967 = vpop.f32.mrf.mxu0
      %v968 = vadd.f32 %v815, %v967
      %v969 = vpop.f32.mrf.mxu0
      %970 = vmatprep.mubr.f32.mxu0 0.0
      %971 = vmatmul.mubr.f32.gmra.mxu0 %v843
      %v972 = vpop.f32.mrf.mxu0
      %v973 = vadd.f32 %v815, %v972
      %v974 = vpop.f32.mrf.mxu0
      %975 = vmatprep.mubr.f32.mxu0 0.0
      %976 = vmatmul.mubr.f32.gmra.mxu0 %v846
      %v977 = vpop.f32.mrf.mxu0
      %v978 = vadd.f32 %v815, %v977
      %v979 = vpop.f32.mrf.mxu0
      %980 = vmatprep.mubr.f32.mxu0 0.0
      %981 = vmatmul.mubr.f32.gmra.mxu0 %v849
      %v982 = vpop.f32.mrf.mxu0
      %v983 = vadd.f32 %v815, %v982
      %v984 = vpop.f32.mrf.mxu0
      %985 = vmatprep.mubr.f32.mxu0 0.0
      %986 = vmatmul.mubr.f32.gmra.mxu0 %v852
      %v987 = vpop.f32.mrf.mxu0
      %v988 = vadd.f32 %v815, %v987
      %v989 = vpop.f32.mrf.mxu0
      %990 = vmatprep.mubr.f32.mxu0 0.0
      %991 = vmatmul.mubr.f32.gmra.mxu0 %v855
      %v992 = vpop.f32.mrf.mxu0
      %v993 = vadd.f32 %v815, %v992
      %v994 = vpop.f32.mrf.mxu0
      %995 = vmatprep.mubr.f32.mxu0 0.0
      %996 = vmatmul.mubr.f32.gmra.mxu0 %v858
      %v997 = vpop.f32.mrf.mxu0
      %v998 = vadd.f32 %v815, %v997
      %v999 = vpop.f32.mrf.mxu0
      %1000 = vmatprep.mubr.f32.mxu0 0.0
      %1001 = vmatmul.mubr.f32.gmra.mxu0 %v861
      %v1002 = vpop.f32.mrf.mxu0
      %v1003 = vadd.f32 %v815, %v1002
      %v1004 = vpop.f32.mrf.mxu0
      %1005 = vmatprep.mubr.f32.mxu0 0.0
      %1006 = vmatmul.mubr.f32.gmra.mxu0 %v864
      %v1007 = vpop.f32.mrf.mxu0
      %v1008 = vadd.f32 %v815, %v1007
      %v1009 = vpop.f32.mrf.mxu0
      %1010 = vdwg.mxu0
      %v1011 = vmax.f32 %v933, 0.0
      %v1012 = vmax.f32 %v938, 0.0
      %v1013 = vmax.f32 %v943, 0.0
      %v1014 = vmax.f32 %v948, 0.0
      %v1015 = vmax.f32 %v953, 0.0
      %v1016 = vmax.f32 %v958, 0.0
      %v1017 = vmax.f32 %v963, 0.0
      %v1018 = vmax.f32 %v968, 0.0
      %v1019 = vmax.f32 %v973, 0.0
      %v1020 = vmax.f32 %v978, 0.0
      %v1021 = vmax.f32 %v983, 0.0
      %v1022 = vmax.f32 %v988, 0.0
      %v1023 = vmax.f32 %v993, 0.0
      %v1024 = vmax.f32 %v998, 0.0
      %v1025 = vmax.f32 %v1003, 0.0
      %v1026 = vmax.f32 %v1008, 0.0
      %v1027 = vld [vmem:[%s6] sm:$0xff]
      %v1028 = vld [vmem:[%s6 + $0x8] sm:$0xff]
      %v1029 = vld [vmem:[%s6 + $0x10] sm:$0xff]
      %v1030 = vld [vmem:[%s6 + $0x18] sm:$0xff]
      %v1031 = vld [vmem:[%s6 + $0x20] sm:$0xff]
      %v1032 = vld [vmem:[%s6 + $0x28] sm:$0xff]
      %v1033 = vld [vmem:[%s6 + $0x30] sm:$0xff]
      %v1034 = vld [vmem:[%s6 + $0x38] sm:$0xff]
      %v1035 = vld [vmem:[%s7] sm:$0x1]
      %v1037 = vlaneseq
      %v1038 = vshrl.u32 %v1037, 7
      %v1039 = vsub.s32 0, %v1038
      %v1040 = vrot.slane %v1035, %v1039
      %v1043 = vsel %vm817, %v1011, 0
      %v1046 = vsel %vm817, %v1012, 0
      %v1049 = vsel %vm817, %v1013, 0
      %v1052 = vsel %vm817, %v1014, 0
      %v1055 = vsel %vm817, %v1015, 0
      %v1058 = vsel %vm817, %v1016, 0
      %v1061 = vsel %vm817, %v1017, 0
      %v1064 = vsel %vm817, %v1018, 0
      %v1067 = vsel %vm817, %v1019, 0
      %v1070 = vsel %vm817, %v1020, 0
      %v1073 = vsel %vm817, %v1021, 0
      %v1076 = vsel %vm817, %v1022, 0
      %v1079 = vsel %vm817, %v1023, 0
      %v1082 = vsel %vm817, %v1024, 0
      %v1085 = vsel %vm817, %v1025, 0
      %v1088 = vsel %vm817, %v1026, 0
      %1090 = vmatprep.subr.mxu0 0.0
      %1091 = vmatpush1.msra.mxu0 0.0
      %1092 = vmatprep.subr.mxu0 0.0
      %1093 = vmatpush1.msra.mxu0 0.0
      %1094 = vmatprep.subr.mxu0 0.0
      %1095 = vmatpush1.msra.mxu0 0.0
      %1096 = vmatprep.subr.mxu0 0.0
      %1097 = vmatpush1.msra.mxu0 0.0
      %1098 = vmatprep.subr.mxu0 0.0
      %1099 = vmatpush1.msra.mxu0 0.0
      %1100 = vmatprep.subr.mxu0 0.0
      %1101 = vmatpush1.msra.mxu0 0.0
      %1102 = vmatprep.subr.mxu0 0.0
      %1103 = vmatpush1.msra.mxu0 0.0
      %1104 = vmatprep.subr.mxu0 0.0
      %1105 = vmatpush1.msra.mxu0 0.0
      %1106 = vmatprep.subr.mxu0 0.0
      %1107 = vmatpush1.msra.mxu0 %v1034
      %1108 = vmatprep.subr.mxu0 0.0
      %1109 = vmatpush1.msra.mxu0 %v1033
      %1110 = vmatprep.subr.mxu0 0.0
      %1111 = vmatpush1.msra.mxu0 %v1032
      %1112 = vmatprep.subr.mxu0 0.0
      %1113 = vmatpush1.msra.mxu0 %v1031
      %1114 = vmatprep.subr.mxu0 0.0
      %1115 = vmatpush1.msra.mxu0 %v1030
      %1116 = vmatprep.subr.mxu0 0.0
      %1117 = vmatpush1.msra.mxu0 %v1029
      %1118 = vmatprep.subr.mxu0 0.0
      %1119 = vmatpush1.msra.mxu0 %v1028
      %1120 = vmatprep.subr.mxu0 0.0
      %1121 = vmatpush1.msra.mxu0 %v1027
      %1122 = vmatprep.subr.mxu0 0.0
      %1123 = vmatpush2.msra.mxu0 0.0
      %1124 = vmatprep.subr.mxu0 0.0
      %1125 = vmatpush2.msra.mxu0 0.0
      %1126 = vmatprep.subr.mxu0 0.0
      %1127 = vmatpush2.msra.mxu0 0.0
      %1128 = vmatprep.subr.mxu0 0.0
      %1129 = vmatpush2.msra.mxu0 0.0
      %1130 = vmatprep.subr.mxu0 0.0
      %1131 = vmatpush2.msra.mxu0 0.0
      %1132 = vmatprep.subr.mxu0 0.0
      %1133 = vmatpush2.msra.mxu0 0.0
      %1134 = vmatprep.subr.mxu0 0.0
      %1135 = vmatpush2.msra.mxu0 0.0
      %1136 = vmatprep.subr.mxu0 0.0
      %1137 = vmatpush2.msra.mxu0 0.0
      %1138 = vmatprep.subr.mxu0 0.0
      %1139 = vmatpush2.msra.mxu0 0.0
      %1140 = vmatprep.subr.mxu0 0.0
      %1141 = vmatpush2.msra.mxu0 0.0
      %1142 = vmatprep.subr.mxu0 0.0
      %1143 = vmatpush2.msra.mxu0 0.0
      %1144 = vmatprep.subr.mxu0 0.0
      %1145 = vmatpush2.msra.mxu0 0.0
      %1146 = vmatprep.subr.mxu0 0.0
      %1147 = vmatpush2.msra.mxu0 0.0
      %1148 = vmatprep.subr.mxu0 0.0
      %1149 = vmatpush2.msra.mxu0 0.0
      %1150 = vmatprep.subr.mxu0 0.0
      %1151 = vmatpush2.msra.mxu0 0.0
      %1152 = vmatprep.subr.mxu0 0.0
      %1153 = vmatpush2.msra.mxu0 0.0
      %1154 = vmatprep.mubr.f32.mxu0 0.0
      %1155 = vmatmul.mubr.f32.gmra.mxu0 %v1043
      %v1156 = vpop.f32.mrf.mxu0
      %v1157 = vadd.f32 %v1040, %v1156
      %v1158 = vpop.f32.mrf.mxu0
      %1159 = vmatprep.mubr.f32.mxu0 0.0
      %1160 = vmatmul.mubr.f32.gmra.mxu0 %v1046
      %v1161 = vpop.f32.mrf.mxu0
      %v1162 = vadd.f32 %v1040, %v1161
      %v1163 = vpop.f32.mrf.mxu0
      %1164 = vmatprep.mubr.f32.mxu0 0.0
      %1165 = vmatmul.mubr.f32.gmra.mxu0 %v1049
      %v1166 = vpop.f32.mrf.mxu0
      %v1167 = vadd.f32 %v1040, %v1166
      %v1168 = vpop.f32.mrf.mxu0
      %1169 = vmatprep.mubr.f32.mxu0 0.0
      %1170 = vmatmul.mubr.f32.gmra.mxu0 %v1052
      %v1171 = vpop.f32.mrf.mxu0
      %v1172 = vadd.f32 %v1040, %v1171
      %v1173 = vpop.f32.mrf.mxu0
      %1174 = vmatprep.mubr.f32.mxu0 0.0
      %1175 = vmatmul.mubr.f32.gmra.mxu0 %v1055
      %v1176 = vpop.f32.mrf.mxu0
      %v1177 = vadd.f32 %v1040, %v1176
      %v1178 = vpop.f32.mrf.mxu0
      %1179 = vmatprep.mubr.f32.mxu0 0.0
      %1180 = vmatmul.mubr.f32.gmra.mxu0 %v1058
      %v1181 = vpop.f32.mrf.mxu0
      %v1182 = vadd.f32 %v1040, %v1181
      %v1183 = vpop.f32.mrf.mxu0
      %1184 = vmatprep.mubr.f32.mxu0 0.0
      %1185 = vmatmul.mubr.f32.gmra.mxu0 %v1061
      %v1186 = vpop.f32.mrf.mxu0
      %v1187 = vadd.f32 %v1040, %v1186
      %v1188 = vpop.f32.mrf.mxu0
      %1189 = vmatprep.mubr.f32.mxu0 0.0
      %1190 = vmatmul.mubr.f32.gmra.mxu0 %v1064
      %v1191 = vpop.f32.mrf.mxu0
      %v1192 = vadd.f32 %v1040, %v1191
      %v1193 = vpop.f32.mrf.mxu0
      %1194 = vmatprep.mubr.f32.mxu0 0.0
      %1195 = vmatmul.mubr.f32.gmra.mxu0 %v1067
      %v1196 = vpop.f32.mrf.mxu0
      %v1197 = vadd.f32 %v1040, %v1196
      %v1198 = vpop.f32.mrf.mxu0
      %1199 = vmatprep.mubr.f32.mxu0 0.0
      %1200 = vmatmul.mubr.f32.gmra.mxu0 %v1070
      %v1201 = vpop.f32.mrf.mxu0
      %v1202 = vadd.f32 %v1040, %v1201
      %v1203 = vpop.f32.mrf.mxu0
      %1204 = vmatprep.mubr.f32.mxu0 0.0
      %1205 = vmatmul.mubr.f32.gmra.mxu0 %v1073
      %v1206 = vpop.f32.mrf.mxu0
      %v1207 = vadd.f32 %v1040, %v1206
      %v1208 = vpop.f32.mrf.mxu0
      %1209 = vmatprep.mubr.f32.mxu0 0.0
      %1210 = vmatmul.mubr.f32.gmra.mxu0 %v1076
      %v1211 = vpop.f32.mrf.mxu0
      %v1212 = vadd.f32 %v1040, %v1211
      %v1213 = vpop.f32.mrf.mxu0
      %1214 = vmatprep.mubr.f32.mxu0 0.0
      %1215 = vmatmul.mubr.f32.gmra.mxu0 %v1079
      %v1216 = vpop.f32.mrf.mxu0
      %v1217 = vadd.f32 %v1040, %v1216
      %v1218 = vpop.f32.mrf.mxu0
      %1219 = vmatprep.mubr.f32.mxu0 0.0
      %1220 = vmatmul.mubr.f32.gmra.mxu0 %v1082
      %v1221 = vpop.f32.mrf.mxu0
      %v1222 = vadd.f32 %v1040, %v1221
      %v1223 = vpop.f32.mrf.mxu0
      %1224 = vmatprep.mubr.f32.mxu0 0.0
      %1225 = vmatmul.mubr.f32.gmra.mxu0 %v1085
      %v1226 = vpop.f32.mrf.mxu0
      %v1227 = vadd.f32 %v1040, %v1226
      %v1228 = vpop.f32.mrf.mxu0
      %1229 = vmatprep.mubr.f32.mxu0 0.0
      %1230 = vmatmul.mubr.f32.gmra.mxu0 %v1088
      %v1231 = vpop.f32.mrf.mxu0
      %v1232 = vadd.f32 %v1040, %v1231
      %v1233 = vpop.f32.mrf.mxu0
      %1234 = vdwg.mxu0
      %v1235 = vmax.f32 %v1157, 0.0
      %v1236 = vmax.f32 %v1162, 0.0
      %v1237 = vmax.f32 %v1167, 0.0
      %v1238 = vmax.f32 %v1172, 0.0
      %v1239 = vmax.f32 %v1177, 0.0
      %v1240 = vmax.f32 %v1182, 0.0
      %v1241 = vmax.f32 %v1187, 0.0
      %v1242 = vmax.f32 %v1192, 0.0
      %v1243 = vmax.f32 %v1197, 0.0
      %v1244 = vmax.f32 %v1202, 0.0
      %v1245 = vmax.f32 %v1207, 0.0
      %v1246 = vmax.f32 %v1212, 0.0
      %v1247 = vmax.f32 %v1217, 0.0
      %v1248 = vmax.f32 %v1222, 0.0
      %v1249 = vmax.f32 %v1227, 0.0
      %v1250 = vmax.f32 %v1232, 0.0
      %v1251 = vld [vmem:[%s8] sm:$0xff]
      %v1252 = vld [vmem:[%s8 + $0x8] sm:$0xff]
      %v1253 = vld [vmem:[%s8 + $0x10] sm:$0xff]
      %v1254 = vld [vmem:[%s8 + $0x18] sm:$0xff]
      %v1255 = vld [vmem:[%s8 + $0x20] sm:$0xff]
      %v1256 = vld [vmem:[%s8 + $0x28] sm:$0xff]
      %v1257 = vld [vmem:[%s8 + $0x30] sm:$0xff]
      %v1258 = vld [vmem:[%s8 + $0x38] sm:$0xff]
      %v1259 = vld [vmem:[%s9] sm:$0x1]
      %v1261 = vlaneseq
      %v1262 = vshrl.u32 %v1261, 7
      %v1263 = vsub.s32 0, %v1262
      %v1264 = vrot.slane %v1259, %v1263
      %v1267 = vsel %vm817, %v1235, 0
      %v1270 = vsel %vm817, %v1236, 0
      %v1273 = vsel %vm817, %v1237, 0
      %v1276 = vsel %vm817, %v1238, 0
      %v1279 = vsel %vm817, %v1239, 0
      %v1282 = vsel %vm817, %v1240, 0
      %v1285 = vsel %vm817, %v1241, 0
      %v1288 = vsel %vm817, %v1242, 0
      %v1291 = vsel %vm817, %v1243, 0
      %v1294 = vsel %vm817, %v1244, 0
      %v1297 = vsel %vm817, %v1245, 0
      %v1300 = vsel %vm817, %v1246, 0
      %v1303 = vsel %vm817, %v1247, 0
      %v1306 = vsel %vm817, %v1248, 0
      %v1309 = vsel %vm817, %v1249, 0
      %v1312 = vsel %vm817, %v1250, 0
      %1314 = vmatprep.subr.mxu0 0.0
      %1315 = vmatpush1.msra.mxu0 0.0
      %1316 = vmatprep.subr.mxu0 0.0
      %1317 = vmatpush1.msra.mxu0 0.0
      %1318 = vmatprep.subr.mxu0 0.0
      %1319 = vmatpush1.msra.mxu0 0.0
      %1320 = vmatprep.subr.mxu0 0.0
      %1321 = vmatpush1.msra.mxu0 0.0
      %1322 = vmatprep.subr.mxu0 0.0
      %1323 = vmatpush1.msra.mxu0 0.0
      %1324 = vmatprep.subr.mxu0 0.0
      %1325 = vmatpush1.msra.mxu0 0.0
      %1326 = vmatprep.subr.mxu0 0.0
      %1327 = vmatpush1.msra.mxu0 0.0
      %1328 = vmatprep.subr.mxu0 0.0
      %1329 = vmatpush1.msra.mxu0 0.0
      %1330 = vmatprep.subr.mxu0 0.0
      %1331 = vmatpush1.msra.mxu0 %v1258
      %1332 = vmatprep.subr.mxu0 0.0
      %1333 = vmatpush1.msra.mxu0 %v1257
      %1334 = vmatprep.subr.mxu0 0.0
      %1335 = vmatpush1.msra.mxu0 %v1256
      %1336 = vmatprep.subr.mxu0 0.0
      %1337 = vmatpush1.msra.mxu0 %v1255
      %1338 = vmatprep.subr.mxu0 0.0
      %1339 = vmatpush1.msra.mxu0 %v1254
      %1340 = vmatprep.subr.mxu0 0.0
      %1341 = vmatpush1.msra.mxu0 %v1253
      %1342 = vmatprep.subr.mxu0 0.0
      %1343 = vmatpush1.msra.mxu0 %v1252
      %1344 = vmatprep.subr.mxu0 0.0
      %1345 = vmatpush1.msra.mxu0 %v1251
      %1346 = vmatprep.subr.mxu0 0.0
      %1347 = vmatpush2.msra.mxu0 0.0
      %1348 = vmatprep.subr.mxu0 0.0
      %1349 = vmatpush2.msra.mxu0 0.0
      %1350 = vmatprep.subr.mxu0 0.0
      %1351 = vmatpush2.msra.mxu0 0.0
      %1352 = vmatprep.subr.mxu0 0.0
      %1353 = vmatpush2.msra.mxu0 0.0
      %1354 = vmatprep.subr.mxu0 0.0
      %1355 = vmatpush2.msra.mxu0 0.0
      %1356 = vmatprep.subr.mxu0 0.0
      %1357 = vmatpush2.msra.mxu0 0.0
      %1358 = vmatprep.subr.mxu0 0.0
      %1359 = vmatpush2.msra.mxu0 0.0
      %1360 = vmatprep.subr.mxu0 0.0
      %1361 = vmatpush2.msra.mxu0 0.0
      %1362 = vmatprep.subr.mxu0 0.0
      %1363 = vmatpush2.msra.mxu0 0.0
      %1364 = vmatprep.subr.mxu0 0.0
      %1365 = vmatpush2.msra.mxu0 0.0
      %1366 = vmatprep.subr.mxu0 0.0
      %1367 = vmatpush2.msra.mxu0 0.0
      %1368 = vmatprep.subr.mxu0 0.0
      %1369 = vmatpush2.msra.mxu0 0.0
      %1370 = vmatprep.subr.mxu0 0.0
      %1371 = vmatpush2.msra.mxu0 0.0
      %1372 = vmatprep.subr.mxu0 0.0
      %1373 = vmatpush2.msra.mxu0 0.0
      %1374 = vmatprep.subr.mxu0 0.0
      %1375 = vmatpush2.msra.mxu0 0.0
      %1376 = vmatprep.subr.mxu0 0.0
      %1377 = vmatpush2.msra.mxu0 0.0
      %1378 = vmatprep.mubr.f32.mxu0 0.0
      %1379 = vmatmul.mubr.f32.gmra.mxu0 %v1267
      %v1380 = vpop.f32.mrf.mxu0
      %v1381 = vadd.f32 %v1264, %v1380
      %v1382 = vpop.f32.mrf.mxu0
      %1383 = vmatprep.mubr.f32.mxu0 0.0
      %1384 = vmatmul.mubr.f32.gmra.mxu0 %v1270
      %v1385 = vpop.f32.mrf.mxu0
      %v1386 = vadd.f32 %v1264, %v1385
      %v1387 = vpop.f32.mrf.mxu0
      %1388 = vmatprep.mubr.f32.mxu0 0.0
      %1389 = vmatmul.mubr.f32.gmra.mxu0 %v1273
      %v1390 = vpop.f32.mrf.mxu0
      %v1391 = vadd.f32 %v1264, %v1390
      %v1392 = vpop.f32.mrf.mxu0
      %1393 = vmatprep.mubr.f32.mxu0 0.0
      %1394 = vmatmul.mubr.f32.gmra.mxu0 %v1276
      %v1395 = vpop.f32.mrf.mxu0
      %v1396 = vadd.f32 %v1264, %v1395
      %v1397 = vpop.f32.mrf.mxu0
      %1398 = vmatprep.mubr.f32.mxu0 0.0
      %1399 = vmatmul.mubr.f32.gmra.mxu0 %v1279
      %v1400 = vpop.f32.mrf.mxu0
      %v1401 = vadd.f32 %v1264, %v1400
      %v1402 = vpop.f32.mrf.mxu0
      %1403 = vmatprep.mubr.f32.mxu0 0.0
      %1404 = vmatmul.mubr.f32.gmra.mxu0 %v1282
      %v1405 = vpop.f32.mrf.mxu0
      %v1406 = vadd.f32 %v1264, %v1405
      %v1407 = vpop.f32.mrf.mxu0
      %1408 = vmatprep.mubr.f32.mxu0 0.0
      %1409 = vmatmul.mubr.f32.gmra.mxu0 %v1285
      %v1410 = vpop.f32.mrf.mxu0
      %v1411 = vadd.f32 %v1264, %v1410
      %v1412 = vpop.f32.mrf.mxu0
      %1413 = vmatprep.mubr.f32.mxu0 0.0
      %1414 = vmatmul.mubr.f32.gmra.mxu0 %v1288
      %v1415 = vpop.f32.mrf.mxu0
      %v1416 = vadd.f32 %v1264, %v1415
      %v1417 = vpop.f32.mrf.mxu0
      %1418 = vmatprep.mubr.f32.mxu0 0.0
      %1419 = vmatmul.mubr.f32.gmra.mxu0 %v1291
      %v1420 = vpop.f32.mrf.mxu0
      %v1421 = vadd.f32 %v1264, %v1420
      %v1422 = vpop.f32.mrf.mxu0
      %1423 = vmatprep.mubr.f32.mxu0 0.0
      %1424 = vmatmul.mubr.f32.gmra.mxu0 %v1294
      %v1425 = vpop.f32.mrf.mxu0
      %v1426 = vadd.f32 %v1264, %v1425
      %v1427 = vpop.f32.mrf.mxu0
      %1428 = vmatprep.mubr.f32.mxu0 0.0
      %1429 = vmatmul.mubr.f32.gmra.mxu0 %v1297
      %v1430 = vpop.f32.mrf.mxu0
      %v1431 = vadd.f32 %v1264, %v1430
      %v1432 = vpop.f32.mrf.mxu0
      %1433 = vmatprep.mubr.f32.mxu0 0.0
      %1434 = vmatmul.mubr.f32.gmra.mxu0 %v1300
      %v1435 = vpop.f32.mrf.mxu0
      %v1436 = vadd.f32 %v1264, %v1435
      %v1437 = vpop.f32.mrf.mxu0
      %1438 = vmatprep.mubr.f32.mxu0 0.0
      %1439 = vmatmul.mubr.f32.gmra.mxu0 %v1303
      %v1440 = vpop.f32.mrf.mxu0
      %v1441 = vadd.f32 %v1264, %v1440
      %v1442 = vpop.f32.mrf.mxu0
      %1443 = vmatprep.mubr.f32.mxu0 0.0
      %1444 = vmatmul.mubr.f32.gmra.mxu0 %v1306
      %v1445 = vpop.f32.mrf.mxu0
      %v1446 = vadd.f32 %v1264, %v1445
      %v1447 = vpop.f32.mrf.mxu0
      %1448 = vmatprep.mubr.f32.mxu0 0.0
      %1449 = vmatmul.mubr.f32.gmra.mxu0 %v1309
      %v1450 = vpop.f32.mrf.mxu0
      %v1451 = vadd.f32 %v1264, %v1450
      %v1452 = vpop.f32.mrf.mxu0
      %1453 = vmatprep.mubr.f32.mxu0 0.0
      %1454 = vmatmul.mubr.f32.gmra.mxu0 %v1312
      %v1455 = vpop.f32.mrf.mxu0
      %v1456 = vadd.f32 %v1264, %v1455
      %v1457 = vpop.f32.mrf.mxu0
      %1458 = vdwg.mxu0
      %v1459 = vmax.f32 %v1381, 0.0
      %v1460 = vmax.f32 %v1386, 0.0
      %v1461 = vmax.f32 %v1391, 0.0
      %v1462 = vmax.f32 %v1396, 0.0
      %v1463 = vmax.f32 %v1401, 0.0
      %v1464 = vmax.f32 %v1406, 0.0
      %v1465 = vmax.f32 %v1411, 0.0
      %v1466 = vmax.f32 %v1416, 0.0
      %v1467 = vmax.f32 %v1421, 0.0
      %v1468 = vmax.f32 %v1426, 0.0
      %v1469 = vmax.f32 %v1431, 0.0
      %v1470 = vmax.f32 %v1436, 0.0
      %v1471 = vmax.f32 %v1441, 0.0
      %v1472 = vmax.f32 %v1446, 0.0
      %v1473 = vmax.f32 %v1451, 0.0
      %v1474 = vmax.f32 %v1456, 0.0
      %v1475 = vld [vmem:[%s10] sm:$0xff]
      %v1476 = vld [vmem:[%s10 + $0x8] sm:$0xff]
      %v1477 = vld [vmem:[%s10 + $0x10] sm:$0xff]
      %v1478 = vld [vmem:[%s10 + $0x18] sm:$0xff]
      %v1479 = vld [vmem:[%s10 + $0x20] sm:$0xff]
      %v1480 = vld [vmem:[%s10 + $0x28] sm:$0xff]
      %v1481 = vld [vmem:[%s10 + $0x30] sm:$0xff]
      %v1482 = vld [vmem:[%s10 + $0x38] sm:$0xff]
      %v1483 = vld [vmem:[%s11] sm:$0x1]
      %v1485 = vlaneseq
      %v1486 = vshrl.u32 %v1485, 7
      %v1487 = vsub.s32 0, %v1486
      %v1488 = vrot.slane %v1483, %v1487
      %v1491 = vsel %vm817, %v1459, 0
      %v1494 = vsel %vm817, %v1460, 0
      %v1497 = vsel %vm817, %v1461, 0
      %v1500 = vsel %vm817, %v1462, 0
      %v1503 = vsel %vm817, %v1463, 0
      %v1506 = vsel %vm817, %v1464, 0
      %v1509 = vsel %vm817, %v1465, 0
      %v1512 = vsel %vm817, %v1466, 0
      %v1515 = vsel %vm817, %v1467, 0
      %v1518 = vsel %vm817, %v1468, 0
      %v1521 = vsel %vm817, %v1469, 0
      %v1524 = vsel %vm817, %v1470, 0
      %v1527 = vsel %vm817, %v1471, 0
      %v1530 = vsel %vm817, %v1472, 0
      %v1533 = vsel %vm817, %v1473, 0
      %v1536 = vsel %vm817, %v1474, 0
      %1538 = vmatprep.subr.mxu0 0.0
      %1539 = vmatpush1.msra.mxu0 0.0
      %1540 = vmatprep.subr.mxu0 0.0
      %1541 = vmatpush1.msra.mxu0 0.0
      %1542 = vmatprep.subr.mxu0 0.0
      %1543 = vmatpush1.msra.mxu0 0.0
      %1544 = vmatprep.subr.mxu0 0.0
      %1545 = vmatpush1.msra.mxu0 0.0
      %1546 = vmatprep.subr.mxu0 0.0
      %1547 = vmatpush1.msra.mxu0 0.0
      %1548 = vmatprep.subr.mxu0 0.0
      %1549 = vmatpush1.msra.mxu0 0.0
      %1550 = vmatprep.subr.mxu0 0.0
      %1551 = vmatpush1.msra.mxu0 0.0
      %1552 = vmatprep.subr.mxu0 0.0
      %1553 = vmatpush1.msra.mxu0 0.0
      %1554 = vmatprep.subr.mxu0 0.0
      %1555 = vmatpush1.msra.mxu0 %v1482
      %1556 = vmatprep.subr.mxu0 0.0
      %1557 = vmatpush1.msra.mxu0 %v1481
      %1558 = vmatprep.subr.mxu0 0.0
      %1559 = vmatpush1.msra.mxu0 %v1480
      %1560 = vmatprep.subr.mxu0 0.0
      %1561 = vmatpush1.msra.mxu0 %v1479
      %1562 = vmatprep.subr.mxu0 0.0
      %1563 = vmatpush1.msra.mxu0 %v1478
      %1564 = vmatprep.subr.mxu0 0.0
      %1565 = vmatpush1.msra.mxu0 %v1477
      %1566 = vmatprep.subr.mxu0 0.0
      %1567 = vmatpush1.msra.mxu0 %v1476
      %1568 = vmatprep.subr.mxu0 0.0
      %1569 = vmatpush1.msra.mxu0 %v1475
      %1570 = vmatprep.subr.mxu0 0.0
      %1571 = vmatpush2.msra.mxu0 0.0
      %1572 = vmatprep.subr.mxu0 0.0
      %1573 = vmatpush2.msra.mxu0 0.0
      %1574 = vmatprep.subr.mxu0 0.0
      %1575 = vmatpush2.msra.mxu0 0.0
      %1576 = vmatprep.subr.mxu0 0.0
      %1577 = vmatpush2.msra.mxu0 0.0
      %1578 = vmatprep.subr.mxu0 0.0
      %1579 = vmatpush2.msra.mxu0 0.0
      %1580 = vmatprep.subr.mxu0 0.0
      %1581 = vmatpush2.msra.mxu0 0.0
      %1582 = vmatprep.subr.mxu0 0.0
      %1583 = vmatpush2.msra.mxu0 0.0
      %1584 = vmatprep.subr.mxu0 0.0
      %1585 = vmatpush2.msra.mxu0 0.0
      %1586 = vmatprep.subr.mxu0 0.0
      %1587 = vmatpush2.msra.mxu0 0.0
      %1588 = vmatprep.subr.mxu0 0.0
      %1589 = vmatpush2.msra.mxu0 0.0
      %1590 = vmatprep.subr.mxu0 0.0
      %1591 = vmatpush2.msra.mxu0 0.0
      %1592 = vmatprep.subr.mxu0 0.0
      %1593 = vmatpush2.msra.mxu0 0.0
      %1594 = vmatprep.subr.mxu0 0.0
      %1595 = vmatpush2.msra.mxu0 0.0
      %1596 = vmatprep.subr.mxu0 0.0
      %1597 = vmatpush2.msra.mxu0 0.0
      %1598 = vmatprep.subr.mxu0 0.0
      %1599 = vmatpush2.msra.mxu0 0.0
      %1600 = vmatprep.subr.mxu0 0.0
      %1601 = vmatpush2.msra.mxu0 0.0
      %1602 = vmatprep.mubr.f32.mxu0 0.0
      %1603 = vmatmul.mubr.f32.gmra.mxu0 %v1491
      %v1604 = vpop.f32.mrf.mxu0
      %v1605 = vadd.f32 %v1488, %v1604
      %v1606 = vpop.f32.mrf.mxu0
      %1607 = vmatprep.mubr.f32.mxu0 0.0
      %1608 = vmatmul.mubr.f32.gmra.mxu0 %v1494
      %v1609 = vpop.f32.mrf.mxu0
      %v1610 = vadd.f32 %v1488, %v1609
      %v1611 = vpop.f32.mrf.mxu0
      %1612 = vmatprep.mubr.f32.mxu0 0.0
      %1613 = vmatmul.mubr.f32.gmra.mxu0 %v1497
      %v1614 = vpop.f32.mrf.mxu0
      %v1615 = vadd.f32 %v1488, %v1614
      %v1616 = vpop.f32.mrf.mxu0
      %1617 = vmatprep.mubr.f32.mxu0 0.0
      %1618 = vmatmul.mubr.f32.gmra.mxu0 %v1500
      %v1619 = vpop.f32.mrf.mxu0
      %v1620 = vadd.f32 %v1488, %v1619
      %v1621 = vpop.f32.mrf.mxu0
      %1622 = vmatprep.mubr.f32.mxu0 0.0
      %1623 = vmatmul.mubr.f32.gmra.mxu0 %v1503
      %v1624 = vpop.f32.mrf.mxu0
      %v1625 = vadd.f32 %v1488, %v1624
      %v1626 = vpop.f32.mrf.mxu0
      %1627 = vmatprep.mubr.f32.mxu0 0.0
      %1628 = vmatmul.mubr.f32.gmra.mxu0 %v1506
      %v1629 = vpop.f32.mrf.mxu0
      %v1630 = vadd.f32 %v1488, %v1629
      %v1631 = vpop.f32.mrf.mxu0
      %1632 = vmatprep.mubr.f32.mxu0 0.0
      %1633 = vmatmul.mubr.f32.gmra.mxu0 %v1509
      %v1634 = vpop.f32.mrf.mxu0
      %v1635 = vadd.f32 %v1488, %v1634
      %v1636 = vpop.f32.mrf.mxu0
      %1637 = vmatprep.mubr.f32.mxu0 0.0
      %1638 = vmatmul.mubr.f32.gmra.mxu0 %v1512
      %v1639 = vpop.f32.mrf.mxu0
      %v1640 = vadd.f32 %v1488, %v1639
      %v1641 = vpop.f32.mrf.mxu0
      %1642 = vmatprep.mubr.f32.mxu0 0.0
      %1643 = vmatmul.mubr.f32.gmra.mxu0 %v1515
      %v1644 = vpop.f32.mrf.mxu0
      %v1645 = vadd.f32 %v1488, %v1644
      %v1646 = vpop.f32.mrf.mxu0
      %1647 = vmatprep.mubr.f32.mxu0 0.0
      %1648 = vmatmul.mubr.f32.gmra.mxu0 %v1518
      %v1649 = vpop.f32.mrf.mxu0
      %v1650 = vadd.f32 %v1488, %v1649
      %v1651 = vpop.f32.mrf.mxu0
      %1652 = vmatprep.mubr.f32.mxu0 0.0
      %1653 = vmatmul.mubr.f32.gmra.mxu0 %v1521
      %v1654 = vpop.f32.mrf.mxu0
      %v1655 = vadd.f32 %v1488, %v1654
      %v1656 = vpop.f32.mrf.mxu0
      %1657 = vmatprep.mubr.f32.mxu0 0.0
      %1658 = vmatmul.mubr.f32.gmra.mxu0 %v1524
      %v1659 = vpop.f32.mrf.mxu0
      %v1660 = vadd.f32 %v1488, %v1659
      %v1661 = vpop.f32.mrf.mxu0
      %1662 = vmatprep.mubr.f32.mxu0 0.0
      %1663 = vmatmul.mubr.f32.gmra.mxu0 %v1527
      %v1664 = vpop.f32.mrf.mxu0
      %v1665 = vadd.f32 %v1488, %v1664
      %v1666 = vpop.f32.mrf.mxu0
      %1667 = vmatprep.mubr.f32.mxu0 0.0
      %1668 = vmatmul.mubr.f32.gmra.mxu0 %v1530
      %v1669 = vpop.f32.mrf.mxu0
      %v1670 = vadd.f32 %v1488, %v1669
      %v1671 = vpop.f32.mrf.mxu0
      %1672 = vmatprep.mubr.f32.mxu0 0.0
      %1673 = vmatmul.mubr.f32.gmra.mxu0 %v1533
      %v1674 = vpop.f32.mrf.mxu0
      %v1675 = vadd.f32 %v1488, %v1674
      %v1676 = vpop.f32.mrf.mxu0
      %1677 = vmatprep.mubr.f32.mxu0 0.0
      %1678 = vmatmul.mubr.f32.gmra.mxu0 %v1536
      %v1679 = vpop.f32.mrf.mxu0
      %v1680 = vadd.f32 %v1488, %v1679
      %v1681 = vpop.f32.mrf.mxu0
      %1682 = vdwg.mxu0
      %v1683 = vmax.f32 %v1605, 0.0
      %v1684 = vmax.f32 %v1610, 0.0
      %v1685 = vmax.f32 %v1615, 0.0
      %v1686 = vmax.f32 %v1620, 0.0
      %v1687 = vmax.f32 %v1625, 0.0
      %v1688 = vmax.f32 %v1630, 0.0
      %v1689 = vmax.f32 %v1635, 0.0
      %v1690 = vmax.f32 %v1640, 0.0
      %v1691 = vmax.f32 %v1645, 0.0
      %v1692 = vmax.f32 %v1650, 0.0
      %v1693 = vmax.f32 %v1655, 0.0
      %v1694 = vmax.f32 %v1660, 0.0
      %v1695 = vmax.f32 %v1665, 0.0
      %v1696 = vmax.f32 %v1670, 0.0
      %v1697 = vmax.f32 %v1675, 0.0
      %v1698 = vmax.f32 %v1680, 0.0
      %v1699 = vld [vmem:[%s12] sm:$0xff]
      %v1700 = vld [vmem:[%s12 + $0x8] sm:$0xff]
      %v1701 = vld [vmem:[%s12 + $0x10] sm:$0xff]
      %v1702 = vld [vmem:[%s12 + $0x18] sm:$0xff]
      %v1703 = vld [vmem:[%s13] sm:$0x1]
      %v1705 = vlaneseq
      %v1706 = vshrl.u32 %v1705, 7
      %v1707 = vsub.s32 0, %v1706
      %v1708 = vrot.slane %v1703, %v1707
      %vm1710 = vcmask 261120
      %v1712 = vsel %vm1710, %v1683, 0
      %v1715 = vsel %vm1710, %v1684, 0
      %v1718 = vsel %vm1710, %v1685, 0
      %v1721 = vsel %vm1710, %v1686, 0
      %v1724 = vsel %vm1710, %v1687, 0
      %v1727 = vsel %vm1710, %v1688, 0
      %v1730 = vsel %vm1710, %v1689, 0
      %v1733 = vsel %vm1710, %v1690, 0
      %v1736 = vsel %vm1710, %v1691, 0
      %v1739 = vsel %vm1710, %v1692, 0
      %v1742 = vsel %vm1710, %v1693, 0
      %v1745 = vsel %vm1710, %v1694, 0
      %v1748 = vsel %vm1710, %v1695, 0
      %v1751 = vsel %vm1710, %v1696, 0
      %v1754 = vsel %vm1710, %v1697, 0
      %v1757 = vsel %vm1710, %v1698, 0
      %1759 = vmatprep.subr.mxu0 0.0
      %1760 = vmatpush1.msra.mxu0 0.0
      %1761 = vmatprep.subr.mxu0 0.0
      %1762 = vmatpush1.msra.mxu0 0.0
      %1763 = vmatprep.subr.mxu0 0.0
      %1764 = vmatpush1.msra.mxu0 0.0
      %1765 = vmatprep.subr.mxu0 0.0
      %1766 = vmatpush1.msra.mxu0 0.0
      %1767 = vmatprep.subr.mxu0 0.0
      %1768 = vmatpush1.msra.mxu0 0.0
      %1769 = vmatprep.subr.mxu0 0.0
      %1770 = vmatpush1.msra.mxu0 0.0
      %1771 = vmatprep.subr.mxu0 0.0
      %1772 = vmatpush1.msra.mxu0 0.0
      %1773 = vmatprep.subr.mxu0 0.0
      %1774 = vmatpush1.msra.mxu0 0.0
      %1775 = vmatprep.subr.mxu0 0.0
      %1776 = vmatpush1.msra.mxu0 0.0
      %1777 = vmatprep.subr.mxu0 0.0
      %1778 = vmatpush1.msra.mxu0 0.0
      %1779 = vmatprep.subr.mxu0 0.0
      %1780 = vmatpush1.msra.mxu0 0.0
      %1781 = vmatprep.subr.mxu0 0.0
      %1782 = vmatpush1.msra.mxu0 0.0
      %1783 = vmatprep.subr.mxu0 0.0
      %1784 = vmatpush1.msra.mxu0 %v1702
      %1785 = vmatprep.subr.mxu0 0.0
      %1786 = vmatpush1.msra.mxu0 %v1701
      %1787 = vmatprep.subr.mxu0 0.0
      %1788 = vmatpush1.msra.mxu0 %v1700
      %1789 = vmatprep.subr.mxu0 0.0
      %1790 = vmatpush1.msra.mxu0 %v1699
      %1791 = vmatprep.subr.mxu0 0.0
      %1792 = vmatpush2.msra.mxu0 0.0
      %1793 = vmatprep.subr.mxu0 0.0
      %1794 = vmatpush2.msra.mxu0 0.0
      %1795 = vmatprep.subr.mxu0 0.0
      %1796 = vmatpush2.msra.mxu0 0.0
      %1797 = vmatprep.subr.mxu0 0.0
      %1798 = vmatpush2.msra.mxu0 0.0
      %1799 = vmatprep.subr.mxu0 0.0
      %1800 = vmatpush2.msra.mxu0 0.0
      %1801 = vmatprep.subr.mxu0 0.0
      %1802 = vmatpush2.msra.mxu0 0.0
      %1803 = vmatprep.subr.mxu0 0.0
      %1804 = vmatpush2.msra.mxu0 0.0
      %1805 = vmatprep.subr.mxu0 0.0
      %1806 = vmatpush2.msra.mxu0 0.0
      %1807 = vmatprep.subr.mxu0 0.0
      %1808 = vmatpush2.msra.mxu0 0.0
      %1809 = vmatprep.subr.mxu0 0.0
      %1810 = vmatpush2.msra.mxu0 0.0
      %1811 = vmatprep.subr.mxu0 0.0
      %1812 = vmatpush2.msra.mxu0 0.0
      %1813 = vmatprep.subr.mxu0 0.0
      %1814 = vmatpush2.msra.mxu0 0.0
      %1815 = vmatprep.subr.mxu0 0.0
      %1816 = vmatpush2.msra.mxu0 0.0
      %1817 = vmatprep.subr.mxu0 0.0
      %1818 = vmatpush2.msra.mxu0 0.0
      %1819 = vmatprep.subr.mxu0 0.0
      %1820 = vmatpush2.msra.mxu0 0.0
      %1821 = vmatprep.subr.mxu0 0.0
      %1822 = vmatpush2.msra.mxu0 0.0
      %1823 = vmatprep.mubr.f32.mxu0 0.0
      %1824 = vmatmul.mubr.f32.gmra.mxu0 %v1712
      %v1825 = vpop.f32.mrf.mxu0
      %v1826 = vadd.f32 %v1708, %v1825
      %v1827 = vpop.f32.mrf.mxu0
      %1828 = vmatprep.mubr.f32.mxu0 0.0
      %1829 = vmatmul.mubr.f32.gmra.mxu0 %v1715
      %v1830 = vpop.f32.mrf.mxu0
      %v1831 = vadd.f32 %v1708, %v1830
      %v1832 = vpop.f32.mrf.mxu0
      %1833 = vmatprep.mubr.f32.mxu0 0.0
      %1834 = vmatmul.mubr.f32.gmra.mxu0 %v1718
      %v1835 = vpop.f32.mrf.mxu0
      %v1836 = vadd.f32 %v1708, %v1835
      %v1837 = vpop.f32.mrf.mxu0
      %1838 = vmatprep.mubr.f32.mxu0 0.0
      %1839 = vmatmul.mubr.f32.gmra.mxu0 %v1721
      %v1840 = vpop.f32.mrf.mxu0
      %v1841 = vadd.f32 %v1708, %v1840
      %v1842 = vpop.f32.mrf.mxu0
      %1843 = vmatprep.mubr.f32.mxu0 0.0
      %1844 = vmatmul.mubr.f32.gmra.mxu0 %v1724
      %v1845 = vpop.f32.mrf.mxu0
      %v1846 = vadd.f32 %v1708, %v1845
      %v1847 = vpop.f32.mrf.mxu0
      %1848 = vmatprep.mubr.f32.mxu0 0.0
      %1849 = vmatmul.mubr.f32.gmra.mxu0 %v1727
      %v1850 = vpop.f32.mrf.mxu0
      %v1851 = vadd.f32 %v1708, %v1850
      %v1852 = vpop.f32.mrf.mxu0
      %1853 = vmatprep.mubr.f32.mxu0 0.0
      %1854 = vmatmul.mubr.f32.gmra.mxu0 %v1730
      %v1855 = vpop.f32.mrf.mxu0
      %v1856 = vadd.f32 %v1708, %v1855
      %v1857 = vpop.f32.mrf.mxu0
      %1858 = vmatprep.mubr.f32.mxu0 0.0
      %1859 = vmatmul.mubr.f32.gmra.mxu0 %v1733
      %v1860 = vpop.f32.mrf.mxu0
      %v1861 = vadd.f32 %v1708, %v1860
      %v1862 = vpop.f32.mrf.mxu0
      %1863 = vmatprep.mubr.f32.mxu0 0.0
      %1864 = vmatmul.mubr.f32.gmra.mxu0 %v1736
      %v1865 = vpop.f32.mrf.mxu0
      %v1866 = vadd.f32 %v1708, %v1865
      %v1867 = vpop.f32.mrf.mxu0
      %1868 = vmatprep.mubr.f32.mxu0 0.0
      %1869 = vmatmul.mubr.f32.gmra.mxu0 %v1739
      %v1870 = vpop.f32.mrf.mxu0
      %v1871 = vadd.f32 %v1708, %v1870
      %v1872 = vpop.f32.mrf.mxu0
      %1873 = vmatprep.mubr.f32.mxu0 0.0
      %1874 = vmatmul.mubr.f32.gmra.mxu0 %v1742
      %v1875 = vpop.f32.mrf.mxu0
      %v1876 = vadd.f32 %v1708, %v1875
      %v1877 = vpop.f32.mrf.mxu0
      %1878 = vmatprep.mubr.f32.mxu0 0.0
      %1879 = vmatmul.mubr.f32.gmra.mxu0 %v1745
      %v1880 = vpop.f32.mrf.mxu0
      %v1881 = vadd.f32 %v1708, %v1880
      %v1882 = vpop.f32.mrf.mxu0
      %1883 = vmatprep.mubr.f32.mxu0 0.0
      %1884 = vmatmul.mubr.f32.gmra.mxu0 %v1748
      %v1885 = vpop.f32.mrf.mxu0
      %v1886 = vadd.f32 %v1708, %v1885
      %v1887 = vpop.f32.mrf.mxu0
      %1888 = vmatprep.mubr.f32.mxu0 0.0
      %1889 = vmatmul.mubr.f32.gmra.mxu0 %v1751
      %v1890 = vpop.f32.mrf.mxu0
      %v1891 = vadd.f32 %v1708, %v1890
      %v1892 = vpop.f32.mrf.mxu0
      %1893 = vmatprep.mubr.f32.mxu0 0.0
      %1894 = vmatmul.mubr.f32.gmra.mxu0 %v1754
      %v1895 = vpop.f32.mrf.mxu0
      %v1896 = vadd.f32 %v1708, %v1895
      %v1897 = vpop.f32.mrf.mxu0
      %1898 = vmatprep.mubr.f32.mxu0 0.0
      %1899 = vmatmul.mubr.f32.gmra.mxu0 %v1757
      %v1900 = vpop.f32.mrf.mxu0
      %v1901 = vadd.f32 %v1708, %v1900
      %v1902 = vpop.f32.mrf.mxu0
      %1903 = vdwg.mxu0
      %v1904 = vld [vmem:[%s14] sm:$0xff]
      %v1905 = vld [vmem:[%s14 + $0x8] sm:$0xff]
      %v1906 = vld [vmem:[%s14 + $0x10] sm:$0xff]
      %v1907 = vld [vmem:[%s14 + $0x18] sm:$0xff]
      %v1908 = vld [vmem:[%s15] sm:$0x1]
      %v1910 = vlaneseq
      %v1911 = vshrl.u32 %v1910, 7
      %v1912 = vsub.s32 0, %v1911
      %v1913 = vrot.slane %v1908, %v1912
      %v1916 = vsel %vm1710, %v563, 0
      %v1919 = vsel %vm1710, %v564, 0
      %v1922 = vsel %vm1710, %v565, 0
      %v1925 = vsel %vm1710, %v566, 0
      %v1928 = vsel %vm1710, %v567, 0
      %v1931 = vsel %vm1710, %v568, 0
      %v1934 = vsel %vm1710, %v569, 0
      %v1937 = vsel %vm1710, %v570, 0
      %v1940 = vsel %vm1710, %v571, 0
      %v1943 = vsel %vm1710, %v572, 0
      %v1946 = vsel %vm1710, %v573, 0
      %v1949 = vsel %vm1710, %v574, 0
      %v1952 = vsel %vm1710, %v575, 0
      %v1955 = vsel %vm1710, %v576, 0
      %v1958 = vsel %vm1710, %v577, 0
      %v1961 = vsel %vm1710, %v578, 0
      %1963 = vmatprep.subr.mxu0 0.0
      %1964 = vmatpush1.msra.mxu0 0.0
      %1965 = vmatprep.subr.mxu0 0.0
      %1966 = vmatpush1.msra.mxu0 0.0
      %1967 = vmatprep.subr.mxu0 0.0
      %1968 = vmatpush1.msra.mxu0 0.0
      %1969 = vmatprep.subr.mxu0 0.0
      %1970 = vmatpush1.msra.mxu0 0.0
      %1971 = vmatprep.subr.mxu0 0.0
      %1972 = vmatpush1.msra.mxu0 0.0
      %1973 = vmatprep.subr.mxu0 0.0
      %1974 = vmatpush1.msra.mxu0 0.0
      %1975 = vmatprep.subr.mxu0 0.0
      %1976 = vmatpush1.msra.mxu0 0.0
      %1977 = vmatprep.subr.mxu0 0.0
      %1978 = vmatpush1.msra.mxu0 0.0
      %1979 = vmatprep.subr.mxu0 0.0
      %1980 = vmatpush1.msra.mxu0 0.0
      %1981 = vmatprep.subr.mxu0 0.0
      %1982 = vmatpush1.msra.mxu0 0.0
      %1983 = vmatprep.subr.mxu0 0.0
      %1984 = vmatpush1.msra.mxu0 0.0
      %1985 = vmatprep.subr.mxu0 0.0
      %1986 = vmatpush1.msra.mxu0 0.0
      %1987 = vmatprep.subr.mxu0 0.0
      %1988 = vmatpush1.msra.mxu0 %v1907
      %1989 = vmatprep.subr.mxu0 0.0
      %1990 = vmatpush1.msra.mxu0 %v1906
      %1991 = vmatprep.subr.mxu0 0.0
      %1992 = vmatpush1.msra.mxu0 %v1905
      %1993 = vmatprep.subr.mxu0 0.0
      %1994 = vmatpush1.msra.mxu0 %v1904
      %1995 = vmatprep.subr.mxu0 0.0
      %1996 = vmatpush2.msra.mxu0 0.0
      %1997 = vmatprep.subr.mxu0 0.0
      %1998 = vmatpush2.msra.mxu0 0.0
      %1999 = vmatprep.subr.mxu0 0.0
      %2000 = vmatpush2.msra.mxu0 0.0
      %2001 = vmatprep.subr.mxu0 0.0
      %2002 = vmatpush2.msra.mxu0 0.0
      %2003 = vmatprep.subr.mxu0 0.0
      %2004 = vmatpush2.msra.mxu0 0.0
      %2005 = vmatprep.subr.mxu0 0.0
      %2006 = vmatpush2.msra.mxu0 0.0
      %2007 = vmatprep.subr.mxu0 0.0
      %2008 = vmatpush2.msra.mxu0 0.0
      %2009 = vmatprep.subr.mxu0 0.0
      %2010 = vmatpush2.msra.mxu0 0.0
      %2011 = vmatprep.subr.mxu0 0.0
      %2012 = vmatpush2.msra.mxu0 0.0
      %2013 = vmatprep.subr.mxu0 0.0
      %2014 = vmatpush2.msra.mxu0 0.0
      %2015 = vmatprep.subr.mxu0 0.0
      %2016 = vmatpush2.msra.mxu0 0.0
      %2017 = vmatprep.subr.mxu0 0.0
      %2018 = vmatpush2.msra.mxu0 0.0
      %2019 = vmatprep.subr.mxu0 0.0
      %2020 = vmatpush2.msra.mxu0 0.0
      %2021 = vmatprep.subr.mxu0 0.0
      %2022 = vmatpush2.msra.mxu0 0.0
      %2023 = vmatprep.subr.mxu0 0.0
      %2024 = vmatpush2.msra.mxu0 0.0
      %2025 = vmatprep.subr.mxu0 0.0
      %2026 = vmatpush2.msra.mxu0 0.0
      %2027 = vmatprep.mubr.f32.mxu0 0.0
      %2028 = vmatmul.mubr.f32.gmra.mxu0 %v1916
      %v2029 = vpop.f32.mrf.mxu0
      %v2030 = vadd.f32 %v1913, %v2029
      %v2031 = vpop.f32.mrf.mxu0
      %2032 = vmatprep.mubr.f32.mxu0 0.0
      %2033 = vmatmul.mubr.f32.gmra.mxu0 %v1919
      %v2034 = vpop.f32.mrf.mxu0
      %v2035 = vadd.f32 %v1913, %v2034
      %v2036 = vpop.f32.mrf.mxu0
      %2037 = vmatprep.mubr.f32.mxu0 0.0
      %2038 = vmatmul.mubr.f32.gmra.mxu0 %v1922
      %v2039 = vpop.f32.mrf.mxu0
      %v2040 = vadd.f32 %v1913, %v2039
      %v2041 = vpop.f32.mrf.mxu0
      %2042 = vmatprep.mubr.f32.mxu0 0.0
      %2043 = vmatmul.mubr.f32.gmra.mxu0 %v1925
      %v2044 = vpop.f32.mrf.mxu0
      %v2045 = vadd.f32 %v1913, %v2044
      %v2046 = vpop.f32.mrf.mxu0
      %2047 = vmatprep.mubr.f32.mxu0 0.0
      %2048 = vmatmul.mubr.f32.gmra.mxu0 %v1928
      %v2049 = vpop.f32.mrf.mxu0
      %v2050 = vadd.f32 %v1913, %v2049
      %v2051 = vpop.f32.mrf.mxu0
      %2052 = vmatprep.mubr.f32.mxu0 0.0
      %2053 = vmatmul.mubr.f32.gmra.mxu0 %v1931
      %v2054 = vpop.f32.mrf.mxu0
      %v2055 = vadd.f32 %v1913, %v2054
      %v2056 = vpop.f32.mrf.mxu0
      %2057 = vmatprep.mubr.f32.mxu0 0.0
      %2058 = vmatmul.mubr.f32.gmra.mxu0 %v1934
      %v2059 = vpop.f32.mrf.mxu0
      %v2060 = vadd.f32 %v1913, %v2059
      %v2061 = vpop.f32.mrf.mxu0
      %2062 = vmatprep.mubr.f32.mxu0 0.0
      %2063 = vmatmul.mubr.f32.gmra.mxu0 %v1937
      %v2064 = vpop.f32.mrf.mxu0
      %v2065 = vadd.f32 %v1913, %v2064
      %v2066 = vpop.f32.mrf.mxu0
      %2067 = vmatprep.mubr.f32.mxu0 0.0
      %2068 = vmatmul.mubr.f32.gmra.mxu0 %v1940
      %v2069 = vpop.f32.mrf.mxu0
      %v2070 = vadd.f32 %v1913, %v2069
      %v2071 = vpop.f32.mrf.mxu0
      %2072 = vmatprep.mubr.f32.mxu0 0.0
      %2073 = vmatmul.mubr.f32.gmra.mxu0 %v1943
      %v2074 = vpop.f32.mrf.mxu0
      %v2075 = vadd.f32 %v1913, %v2074
      %v2076 = vpop.f32.mrf.mxu0
      %2077 = vmatprep.mubr.f32.mxu0 0.0
      %2078 = vmatmul.mubr.f32.gmra.mxu0 %v1946
      %v2079 = vpop.f32.mrf.mxu0
      %v2080 = vadd.f32 %v1913, %v2079
      %v2081 = vpop.f32.mrf.mxu0
      %2082 = vmatprep.mubr.f32.mxu0 0.0
      %2083 = vmatmul.mubr.f32.gmra.mxu0 %v1949
      %v2084 = vpop.f32.mrf.mxu0
      %v2085 = vadd.f32 %v1913, %v2084
      %v2086 = vpop.f32.mrf.mxu0
      %2087 = vmatprep.mubr.f32.mxu0 0.0
      %2088 = vmatmul.mubr.f32.gmra.mxu0 %v1952
      %v2089 = vpop.f32.mrf.mxu0
      %v2090 = vadd.f32 %v1913, %v2089
      %v2091 = vpop.f32.mrf.mxu0
      %2092 = vmatprep.mubr.f32.mxu0 0.0
      %2093 = vmatmul.mubr.f32.gmra.mxu0 %v1955
      %v2094 = vpop.f32.mrf.mxu0
      %v2095 = vadd.f32 %v1913, %v2094
      %v2096 = vpop.f32.mrf.mxu0
      %2097 = vmatprep.mubr.f32.mxu0 0.0
      %2098 = vmatmul.mubr.f32.gmra.mxu0 %v1958
      %v2099 = vpop.f32.mrf.mxu0
      %v2100 = vadd.f32 %v1913, %v2099
      %v2101 = vpop.f32.mrf.mxu0
      %2102 = vmatprep.mubr.f32.mxu0 0.0
      %2103 = vmatmul.mubr.f32.gmra.mxu0 %v1961
      %v2104 = vpop.f32.mrf.mxu0
      %v2105 = vadd.f32 %v1913, %v2104
      %v2106 = vpop.f32.mrf.mxu0
      %2107 = vdwg.mxu0
      %v2108 = vadd.f32 %v1826, %v2030
      %v2109 = vadd.f32 %v1831, %v2035
      %v2110 = vadd.f32 %v1836, %v2040
      %v2111 = vadd.f32 %v1841, %v2045
      %v2112 = vadd.f32 %v1846, %v2050
      %v2113 = vadd.f32 %v1851, %v2055
      %v2114 = vadd.f32 %v1856, %v2060
      %v2115 = vadd.f32 %v1861, %v2065
      %v2116 = vadd.f32 %v1866, %v2070
      %v2117 = vadd.f32 %v1871, %v2075
      %v2118 = vadd.f32 %v1876, %v2080
      %v2119 = vadd.f32 %v1881, %v2085
      %v2120 = vadd.f32 %v1886, %v2090
      %v2121 = vadd.f32 %v1891, %v2095
      %v2122 = vadd.f32 %v1896, %v2100
      %v2123 = vadd.f32 %v1901, %v2105
      %v2124 = vxor.u32 %v2108, 2147483648
      %v2125 = vxor.u32 %v2109, 2147483648
      %v2126 = vxor.u32 %v2110, 2147483648
      %v2127 = vxor.u32 %v2111, 2147483648
      %v2128 = vxor.u32 %v2112, 2147483648
      %v2129 = vxor.u32 %v2113, 2147483648
      %v2130 = vxor.u32 %v2114, 2147483648
      %v2131 = vxor.u32 %v2115, 2147483648
      %v2132 = vxor.u32 %v2116, 2147483648
      %v2133 = vxor.u32 %v2117, 2147483648
      %v2134 = vxor.u32 %v2118, 2147483648
      %v2135 = vxor.u32 %v2119, 2147483648
      %v2136 = vxor.u32 %v2120, 2147483648
      %v2137 = vxor.u32 %v2121, 2147483648
      %v2138 = vxor.u32 %v2122, 2147483648
      %v2139 = vxor.u32 %v2123, 2147483648
      %v2140 = vmul.f32 %v2124, 1.442695
      %v2141 = vpow.pop %v2140
      %v2142 = vmul.f32 %v2125, 1.442695
      %v2143 = vpow.pop %v2142
      %v2144 = vmul.f32 %v2126, 1.442695
      %v2145 = vpow.pop %v2144
      %v2146 = vmul.f32 %v2127, 1.442695
      %v2147 = vpow.pop %v2146
      %v2148 = vmul.f32 %v2128, 1.442695
      %v2149 = vpow.pop %v2148
      %v2150 = vmul.f32 %v2129, 1.442695
      %v2151 = vpow.pop %v2150
      %v2152 = vmul.f32 %v2130, 1.442695
      %v2153 = vpow.pop %v2152
      %v2154 = vmul.f32 %v2131, 1.442695
      %v2155 = vpow.pop %v2154
      %v2156 = vmul.f32 %v2132, 1.442695
      %v2157 = vpow.pop %v2156
      %v2158 = vmul.f32 %v2133, 1.442695
      %v2159 = vpow.pop %v2158
      %v2160 = vmul.f32 %v2134, 1.442695
      %v2161 = vpow.pop %v2160
      %v2162 = vmul.f32 %v2135, 1.442695
      %v2163 = vpow.pop %v2162
      %v2164 = vmul.f32 %v2136, 1.442695
      %v2165 = vpow.pop %v2164
      %v2166 = vmul.f32 %v2137, 1.442695
      %v2167 = vpow.pop %v2166
      %v2168 = vmul.f32 %v2138, 1.442695
      %v2169 = vpow.pop %v2168
      %v2170 = vmul.f32 %v2139, 1.442695
      %v2171 = vpow.pop %v2170
      %v2172 = vadd.f32 %v2141, 1.0
      %v2173 = vadd.f32 %v2143, 1.0
      %v2174 = vadd.f32 %v2145, 1.0
      %v2175 = vadd.f32 %v2147, 1.0
      %v2176 = vadd.f32 %v2149, 1.0
      %v2177 = vadd.f32 %v2151, 1.0
      %v2178 = vadd.f32 %v2153, 1.0
      %v2179 = vadd.f32 %v2155, 1.0
      %v2180 = vadd.f32 %v2157, 1.0
      %v2181 = vadd.f32 %v2159, 1.0
      %v2182 = vadd.f32 %v2161, 1.0
      %v2183 = vadd.f32 %v2163, 1.0
      %v2184 = vadd.f32 %v2165, 1.0
      %v2185 = vadd.f32 %v2167, 1.0
      %v2186 = vadd.f32 %v2169, 1.0
      %v2187 = vadd.f32 %v2171, 1.0
      %v2188 = vrcp.pop %v2172
      %v2189 = vmul.f32 1.0, %v2188
      %v2190 = vrcp.pop %v2173
      %v2191 = vmul.f32 1.0, %v2190
      %v2192 = vrcp.pop %v2174
      %v2193 = vmul.f32 1.0, %v2192
      %v2194 = vrcp.pop %v2175
      %v2195 = vmul.f32 1.0, %v2194
      %v2196 = vrcp.pop %v2176
      %v2197 = vmul.f32 1.0, %v2196
      %v2198 = vrcp.pop %v2177
      %v2199 = vmul.f32 1.0, %v2198
      %v2200 = vrcp.pop %v2178
      %v2201 = vmul.f32 1.0, %v2200
      %v2202 = vrcp.pop %v2179
      %v2203 = vmul.f32 1.0, %v2202
      %v2204 = vrcp.pop %v2180
      %v2205 = vmul.f32 1.0, %v2204
      %v2206 = vrcp.pop %v2181
      %v2207 = vmul.f32 1.0, %v2206
      %v2208 = vrcp.pop %v2182
      %v2209 = vmul.f32 1.0, %v2208
      %v2210 = vrcp.pop %v2183
      %v2211 = vmul.f32 1.0, %v2210
      %v2212 = vrcp.pop %v2184
      %v2213 = vmul.f32 1.0, %v2212
      %v2214 = vrcp.pop %v2185
      %v2215 = vmul.f32 1.0, %v2214
      %v2216 = vrcp.pop %v2186
      %v2217 = vmul.f32 1.0, %v2216
      %v2218 = vrcp.pop %v2187
      %v2219 = vmul.f32 1.0, %v2218
      %2236 = vrot.lane.b32.xlu0 %v2030, 64
      %v2237 = vpop.permute.xlu0 %2236
      %2238 = vrot.lane.b32.xlu0 %v2035, 64
      %v2239 = vpop.permute.xlu0 %2238
      %2240 = vrot.lane.b32.xlu0 %v2040, 64
      %v2241 = vpop.permute.xlu0 %2240
      %2242 = vrot.lane.b32.xlu0 %v2045, 64
      %v2243 = vpop.permute.xlu0 %2242
      %2244 = vrot.lane.b32.xlu0 %v2050, 64
      %v2245 = vpop.permute.xlu0 %2244
      %2246 = vrot.lane.b32.xlu0 %v2055, 64
      %v2247 = vpop.permute.xlu0 %2246
      %2248 = vrot.lane.b32.xlu0 %v2060, 64
      %v2249 = vpop.permute.xlu0 %2248
      %2250 = vrot.lane.b32.xlu0 %v2065, 64
      %v2251 = vpop.permute.xlu0 %2250
      %2252 = vrot.lane.b32.xlu0 %v2070, 64
      %v2253 = vpop.permute.xlu0 %2252
      %2254 = vrot.lane.b32.xlu0 %v2075, 64
      %v2255 = vpop.permute.xlu0 %2254
      %2256 = vrot.lane.b32.xlu0 %v2080, 64
      %v2257 = vpop.permute.xlu0 %2256
      %2258 = vrot.lane.b32.xlu0 %v2085, 64
      %v2259 = vpop.permute.xlu0 %2258
      %2260 = vrot.lane.b32.xlu0 %v2090, 64
      %v2261 = vpop.permute.xlu0 %2260
      %2262 = vrot.lane.b32.xlu0 %v2095, 64
      %v2263 = vpop.permute.xlu0 %2262
      %2264 = vrot.lane.b32.xlu0 %v2100, 64
      %v2265 = vpop.permute.xlu0 %2264
      %2266 = vrot.lane.b32.xlu0 %v2105, 64
      %v2267 = vpop.permute.xlu0 %2266
      %v2284 = vmul.f32 %v2189, %v2237
      %v2285 = vmul.f32 %v2191, %v2239
      %v2286 = vmul.f32 %v2193, %v2241
      %v2287 = vmul.f32 %v2195, %v2243
      %v2288 = vmul.f32 %v2197, %v2245
      %v2289 = vmul.f32 %v2199, %v2247
      %v2290 = vmul.f32 %v2201, %v2249
      %v2291 = vmul.f32 %v2203, %v2251
      %v2292 = vmul.f32 %v2205, %v2253
      %v2293 = vmul.f32 %v2207, %v2255
      %v2294 = vmul.f32 %v2209, %v2257
      %v2295 = vmul.f32 %v2211, %v2259
      %v2296 = vmul.f32 %v2213, %v2261
      %v2297 = vmul.f32 %v2215, %v2263
      %v2298 = vmul.f32 %v2217, %v2265
      %v2299 = vmul.f32 %v2219, %v2267
      %2316 = vrot.lane.b32.xlu0 %v2284, 64
      %v2317 = vpop.permute.xlu0 %2316
      %2318 = vrot.lane.b32.xlu0 %v2285, 64
      %v2319 = vpop.permute.xlu0 %2318
      %2320 = vrot.lane.b32.xlu0 %v2286, 64
      %v2321 = vpop.permute.xlu0 %2320
      %2322 = vrot.lane.b32.xlu0 %v2287, 64
      %v2323 = vpop.permute.xlu0 %2322
      %2324 = vrot.lane.b32.xlu0 %v2288, 64
      %v2325 = vpop.permute.xlu0 %2324
      %2326 = vrot.lane.b32.xlu0 %v2289, 64
      %v2327 = vpop.permute.xlu0 %2326
      %2328 = vrot.lane.b32.xlu0 %v2290, 64
      %v2329 = vpop.permute.xlu0 %2328
      %2330 = vrot.lane.b32.xlu0 %v2291, 64
      %v2331 = vpop.permute.xlu0 %2330
      %2332 = vrot.lane.b32.xlu0 %v2292, 64
      %v2333 = vpop.permute.xlu0 %2332
      %2334 = vrot.lane.b32.xlu0 %v2293, 64
      %v2335 = vpop.permute.xlu0 %2334
      %2336 = vrot.lane.b32.xlu0 %v2294, 64
      %v2337 = vpop.permute.xlu0 %2336
      %2338 = vrot.lane.b32.xlu0 %v2295, 64
      %v2339 = vpop.permute.xlu0 %2338
      %2340 = vrot.lane.b32.xlu0 %v2296, 64
      %v2341 = vpop.permute.xlu0 %2340
      %2342 = vrot.lane.b32.xlu0 %v2297, 64
      %v2343 = vpop.permute.xlu0 %2342
      %2344 = vrot.lane.b32.xlu0 %v2298, 64
      %v2345 = vpop.permute.xlu0 %2344
      %2346 = vrot.lane.b32.xlu0 %v2299, 64
      %v2347 = vpop.permute.xlu0 %2346
      %v2364 = vadd.f32 %v1826, %v2317
      %v2365 = vadd.f32 %v1831, %v2319
      %v2366 = vadd.f32 %v1836, %v2321
      %v2367 = vadd.f32 %v1841, %v2323
      %v2368 = vadd.f32 %v1846, %v2325
      %v2369 = vadd.f32 %v1851, %v2327
      %v2370 = vadd.f32 %v1856, %v2329
      %v2371 = vadd.f32 %v1861, %v2331
      %v2372 = vadd.f32 %v1866, %v2333
      %v2373 = vadd.f32 %v1871, %v2335
      %v2374 = vadd.f32 %v1876, %v2337
      %v2375 = vadd.f32 %v1881, %v2339
      %v2376 = vadd.f32 %v1886, %v2341
      %v2377 = vadd.f32 %v1891, %v2343
      %v2378 = vadd.f32 %v1896, %v2345
      %v2379 = vadd.f32 %v1901, %v2347
      %v2380 = vtanh.pop %v2364
      %v2381 = vtanh.pop %v2365
      %v2382 = vtanh.pop %v2366
      %v2383 = vtanh.pop %v2367
      %v2384 = vtanh.pop %v2368
      %v2385 = vtanh.pop %v2369
      %v2386 = vtanh.pop %v2370
      %v2387 = vtanh.pop %v2371
      %v2388 = vtanh.pop %v2372
      %v2389 = vtanh.pop %v2373
      %v2390 = vtanh.pop %v2374
      %v2391 = vtanh.pop %v2375
      %v2392 = vtanh.pop %v2376
      %v2393 = vtanh.pop %v2377
      %v2394 = vtanh.pop %v2378
      %v2395 = vtanh.pop %v2379
      %v2396 = vsub.f32 1.0, %v2189
      %v2397 = vsub.f32 1.0, %v2191
      %v2398 = vsub.f32 1.0, %v2193
      %v2399 = vsub.f32 1.0, %v2195
      %v2400 = vsub.f32 1.0, %v2197
      %v2401 = vsub.f32 1.0, %v2199
      %v2402 = vsub.f32 1.0, %v2201
      %v2403 = vsub.f32 1.0, %v2203
      %v2404 = vsub.f32 1.0, %v2205
      %v2405 = vsub.f32 1.0, %v2207
      %v2406 = vsub.f32 1.0, %v2209
      %v2407 = vsub.f32 1.0, %v2211
      %v2408 = vsub.f32 1.0, %v2213
      %v2409 = vsub.f32 1.0, %v2215
      %v2410 = vsub.f32 1.0, %v2217
      %v2411 = vsub.f32 1.0, %v2219
      %2428 = vrot.lane.b32.xlu0 %v2380, 96
      %v2429 = vpop.permute.xlu0 %2428
      %2430 = vrot.lane.b32.xlu0 %v2381, 96
      %v2431 = vpop.permute.xlu0 %2430
      %2432 = vrot.lane.b32.xlu0 %v2382, 96
      %v2433 = vpop.permute.xlu0 %2432
      %2434 = vrot.lane.b32.xlu0 %v2383, 96
      %v2435 = vpop.permute.xlu0 %2434
      %2436 = vrot.lane.b32.xlu0 %v2384, 96
      %v2437 = vpop.permute.xlu0 %2436
      %2438 = vrot.lane.b32.xlu0 %v2385, 96
      %v2439 = vpop.permute.xlu0 %2438
      %2440 = vrot.lane.b32.xlu0 %v2386, 96
      %v2441 = vpop.permute.xlu0 %2440
      %2442 = vrot.lane.b32.xlu0 %v2387, 96
      %v2443 = vpop.permute.xlu0 %2442
      %2444 = vrot.lane.b32.xlu0 %v2388, 96
      %v2445 = vpop.permute.xlu0 %2444
      %2446 = vrot.lane.b32.xlu0 %v2389, 96
      %v2447 = vpop.permute.xlu0 %2446
      %2448 = vrot.lane.b32.xlu0 %v2390, 96
      %v2449 = vpop.permute.xlu0 %2448
      %2450 = vrot.lane.b32.xlu0 %v2391, 96
      %v2451 = vpop.permute.xlu0 %2450
      %2452 = vrot.lane.b32.xlu0 %v2392, 96
      %v2453 = vpop.permute.xlu0 %2452
      %2454 = vrot.lane.b32.xlu0 %v2393, 96
      %v2455 = vpop.permute.xlu0 %2454
      %2456 = vrot.lane.b32.xlu0 %v2394, 96
      %v2457 = vpop.permute.xlu0 %2456
      %2458 = vrot.lane.b32.xlu0 %v2395, 96
      %v2459 = vpop.permute.xlu0 %2458
      %v2476 = vmul.f32 %v2396, %v2429
      %v2477 = vmul.f32 %v2397, %v2431
      %v2478 = vmul.f32 %v2398, %v2433
      %v2479 = vmul.f32 %v2399, %v2435
      %v2480 = vmul.f32 %v2400, %v2437
      %v2481 = vmul.f32 %v2401, %v2439
      %v2482 = vmul.f32 %v2402, %v2441
      %v2483 = vmul.f32 %v2403, %v2443
      %v2484 = vmul.f32 %v2404, %v2445
      %v2485 = vmul.f32 %v2405, %v2447
      %v2486 = vmul.f32 %v2406, %v2449
      %v2487 = vmul.f32 %v2407, %v2451
      %v2488 = vmul.f32 %v2408, %v2453
      %v2489 = vmul.f32 %v2409, %v2455
      %v2490 = vmul.f32 %v2410, %v2457
      %v2491 = vmul.f32 %v2411, %v2459
      %2492 = vrot.lane.b32.xlu0 %v563, 32
      %v2493 = vpop.permute.xlu0 %2492
      %2494 = vrot.lane.b32.xlu0 %v564, 32
      %v2495 = vpop.permute.xlu0 %2494
      %2496 = vrot.lane.b32.xlu0 %v565, 32
      %v2497 = vpop.permute.xlu0 %2496
      %2498 = vrot.lane.b32.xlu0 %v566, 32
      %v2499 = vpop.permute.xlu0 %2498
      %2500 = vrot.lane.b32.xlu0 %v567, 32
      %v2501 = vpop.permute.xlu0 %2500
      %2502 = vrot.lane.b32.xlu0 %v568, 32
      %v2503 = vpop.permute.xlu0 %2502
      %2504 = vrot.lane.b32.xlu0 %v569, 32
      %v2505 = vpop.permute.xlu0 %2504
      %2506 = vrot.lane.b32.xlu0 %v570, 32
      %v2507 = vpop.permute.xlu0 %2506
      %2508 = vrot.lane.b32.xlu0 %v571, 32
      %v2509 = vpop.permute.xlu0 %2508
      %2510 = vrot.lane.b32.xlu0 %v572, 32
      %v2511 = vpop.permute.xlu0 %2510
      %2512 = vrot.lane.b32.xlu0 %v573, 32
      %v2513 = vpop.permute.xlu0 %2512
      %2514 = vrot.lane.b32.xlu0 %v574, 32
      %v2515 = vpop.permute.xlu0 %2514
      %2516 = vrot.lane.b32.xlu0 %v575, 32
      %v2517 = vpop.permute.xlu0 %2516
      %2518 = vrot.lane.b32.xlu0 %v576, 32
      %v2519 = vpop.permute.xlu0 %2518
      %2520 = vrot.lane.b32.xlu0 %v577, 32
      %v2521 = vpop.permute.xlu0 %2520
      %2522 = vrot.lane.b32.xlu0 %v578, 32
      %v2523 = vpop.permute.xlu0 %2522
      %v2540 = vmul.f32 %v2189, %v2493
      %v2541 = vmul.f32 %v2191, %v2495
      %v2542 = vmul.f32 %v2193, %v2497
      %v2543 = vmul.f32 %v2195, %v2499
      %v2544 = vmul.f32 %v2197, %v2501
      %v2545 = vmul.f32 %v2199, %v2503
      %v2546 = vmul.f32 %v2201, %v2505
      %v2547 = vmul.f32 %v2203, %v2507
      %v2548 = vmul.f32 %v2205, %v2509
      %v2549 = vmul.f32 %v2207, %v2511
      %v2550 = vmul.f32 %v2209, %v2513
      %v2551 = vmul.f32 %v2211, %v2515
      %v2552 = vmul.f32 %v2213, %v2517
      %v2553 = vmul.f32 %v2215, %v2519
      %v2554 = vmul.f32 %v2217, %v2521
      %v2555 = vmul.f32 %v2219, %v2523
      %v2556 = vadd.f32 %v2476, %v2540
      %v2557 = vadd.f32 %v2477, %v2541
      %v2558 = vadd.f32 %v2478, %v2542
      %v2559 = vadd.f32 %v2479, %v2543
      %v2560 = vadd.f32 %v2480, %v2544
      %v2561 = vadd.f32 %v2481, %v2545
      %v2562 = vadd.f32 %v2482, %v2546
      %v2563 = vadd.f32 %v2483, %v2547
      %v2564 = vadd.f32 %v2484, %v2548
      %v2565 = vadd.f32 %v2485, %v2549
      %v2566 = vadd.f32 %v2486, %v2550
      %v2567 = vadd.f32 %v2487, %v2551
      %v2568 = vadd.f32 %v2488, %v2552
      %v2569 = vadd.f32 %v2489, %v2553
      %v2570 = vadd.f32 %v2490, %v2554
      %v2571 = vadd.f32 %v2491, %v2555
      %2588 = vrot.lane.b32.xlu0 %v2556, 96
      %v2589 = vpop.permute.xlu0 %2588
      %2590 = vrot.lane.b32.xlu0 %v2557, 96
      %v2591 = vpop.permute.xlu0 %2590
      %2592 = vrot.lane.b32.xlu0 %v2558, 96
      %v2593 = vpop.permute.xlu0 %2592
      %2594 = vrot.lane.b32.xlu0 %v2559, 96
      %v2595 = vpop.permute.xlu0 %2594
      %2596 = vrot.lane.b32.xlu0 %v2560, 96
      %v2597 = vpop.permute.xlu0 %2596
      %2598 = vrot.lane.b32.xlu0 %v2561, 96
      %v2599 = vpop.permute.xlu0 %2598
      %2600 = vrot.lane.b32.xlu0 %v2562, 96
      %v2601 = vpop.permute.xlu0 %2600
      %2602 = vrot.lane.b32.xlu0 %v2563, 96
      %v2603 = vpop.permute.xlu0 %2602
      %2604 = vrot.lane.b32.xlu0 %v2564, 96
      %v2605 = vpop.permute.xlu0 %2604
      %2606 = vrot.lane.b32.xlu0 %v2565, 96
      %v2607 = vpop.permute.xlu0 %2606
      %2608 = vrot.lane.b32.xlu0 %v2566, 96
      %v2609 = vpop.permute.xlu0 %2608
      %2610 = vrot.lane.b32.xlu0 %v2567, 96
      %v2611 = vpop.permute.xlu0 %2610
      %2612 = vrot.lane.b32.xlu0 %v2568, 96
      %v2613 = vpop.permute.xlu0 %2612
      %2614 = vrot.lane.b32.xlu0 %v2569, 96
      %v2615 = vpop.permute.xlu0 %2614
      %2616 = vrot.lane.b32.xlu0 %v2570, 96
      %v2617 = vpop.permute.xlu0 %2616
      %2618 = vrot.lane.b32.xlu0 %v2571, 96
      %v2619 = vpop.permute.xlu0 %2618
      %2636 = vst.msk [vmem:[%s545] sm:$0xff] %vm1710, %v2589
      %2637 = vst.msk [vmem:[%s545 + $0x8] sm:$0xff] %vm1710, %v2591
      %2638 = vst.msk [vmem:[%s545 + $0x10] sm:$0xff] %vm1710, %v2593
      %2639 = vst.msk [vmem:[%s545 + $0x18] sm:$0xff] %vm1710, %v2595
      %2640 = vst.msk [vmem:[%s545 + $0x20] sm:$0xff] %vm1710, %v2597
      %2641 = vst.msk [vmem:[%s545 + $0x28] sm:$0xff] %vm1710, %v2599
      %2642 = vst.msk [vmem:[%s545 + $0x30] sm:$0xff] %vm1710, %v2601
      %2643 = vst.msk [vmem:[%s545 + $0x38] sm:$0xff] %vm1710, %v2603
      %2644 = vst.msk [vmem:[%s545 + $0x40] sm:$0xff] %vm1710, %v2605
      %2645 = vst.msk [vmem:[%s545 + $0x48] sm:$0xff] %vm1710, %v2607
      %2646 = vst.msk [vmem:[%s545 + $0x50] sm:$0xff] %vm1710, %v2609
      %2647 = vst.msk [vmem:[%s545 + $0x58] sm:$0xff] %vm1710, %v2611
      %2648 = vst.msk [vmem:[%s545 + $0x60] sm:$0xff] %vm1710, %v2613
      %2649 = vst.msk [vmem:[%s545 + $0x68] sm:$0xff] %vm1710, %v2615
      %2650 = vst.msk [vmem:[%s545 + $0x70] sm:$0xff] %vm1710, %v2617
      %2651 = vst.msk [vmem:[%s545 + $0x78] sm:$0xff] %vm1710, %v2619
      %s2652 = smul.u32 16, %s27
      %p2653 = scmp.lt.s32.totalorder %s2652, 31
      %s2654 = scalar_select %p2653, %s2652, 31
      %s2655 = smul.addr %s2654, 8
      %s2656 = scalar_lea.vmem %s16, %s2655
      // Predicated region
      $region85: #{feature_layer_forward.1} parent=83 // pred_check
        %p2657 = pneg %p391
      $region86: #{feature_layer_forward.1} parent=83 // pred_check_branch
        %2659 = sbr.rel (%p2657) target = $region88
      $region87: #{feature_layer_forward.1} parent=83 // pred_region
        %s2660 = smul.u32 16, %s27
      $region88: #{feature_layer_forward.1} parent=83 // pred_fallthru
        _
    $region84: #{feature_layer_forward.1} parent=5 // pred_fallthru
      _
    %p2661 = scmp.le.s32.totalorder 2, %s22
    // Predicated region
    $region89: #{feature_layer_forward.1} parent=5 // pred_check
      %p2662 = pneg %p2661
    $region90: #{feature_layer_forward.1} parent=5 // pred_check_branch
      %2664 = sbr.rel (%p2662) target = $region92
    $region91: #{feature_layer_forward.1} parent=5 // pred_region
      %s2665 = ssub.s32 %s22, 2
      // Predicated region
      $region93: #{feature_layer_forward.1} parent=91 // pred_check
        %p2666 = pneg %p397
      $region94: #{feature_layer_forward.1} parent=91 // pred_check_branch
        %2668 = sbr.rel (%p2666) target = $region96
      $region95: #{feature_layer_forward.1} parent=91 // pred_region
        %s2669 = smul.u32 16, %s28
        %p2670 = scmp.lt.s32.totalorder %s2669, 31
        %s2671 = scalar_select %p2670, %s2669, 31
        %s2672 = smul.addr %s2671, 8
        %s2673 = scalar_lea.vmem %s16, %s2672
      $region96: #{feature_layer_forward.1} parent=91 // pred_fallthru
        _
    $region92: #{feature_layer_forward.1} parent=5 // pred_fallthru
      _
  $region6: #{feature_layer_forward.1} parent=0 // loop_footer
    %s26 = sadd.s32 1, %s22
  $region7: #{feature_layer_forward.1} parent=0 // loop_footer_branch
    %21 = sbr.rel target = $region3
  $region8: #{feature_layer_forward.1} parent=0 // loop_exit
    _

</llo_original>
